<compile_context>
chip_gen: v5e
topology: v5e:2x2
jax: 0.10.0
libtpu: 0.0.40
codegen_flags: <defaults>
</compile_context>

<pallas_src>
import functools

import jax
import jax.numpy as jnp
from jax import lax
from jax.experimental import pallas as pl
from jax.experimental.pallas import tpu as pltpu

IN_C = 1024
OUT_C = 100
HW = 14 * 14


def san_kernel(x_ref, w_ref, b_ref, o_ref):
    # x: (1024, 196) f32 (leading batch dim squeezed out)
    # w: (100, 1024) bf16  -- grid-invariant, stays resident in VMEM
    # b: (100, 1)    f32   -- grid-invariant
    # o: (100, 196)  f32
    x = x_ref[...].astype(jnp.bfloat16)          # per-tile cast (VPU), avoids a
    acc = jnp.dot(w_ref[...], x,                 # separate XLA cast pass in HBM
                  preferred_element_type=jnp.float32)
    o_ref[...] = acc + b_ref[...]                # (100,1) broadcast over lanes


def prepare_params(params):
    """One-time fold of the affine chain into (W_eff^T, b_eff).

    Hoisted out of the per-forward path: call once and reuse the result.
    """
    wt, bt, w1, b1, w2 = params
    hi = lax.Precision.HIGHEST

    # fc2 applied independently to the five 300-chunks of the 1500-dim vector
    # == multiplying by a (1500, 100) block-diagonal matrix of fc2.weight.T.
    w2t = w2.T.astype(jnp.float32)                               # (300, 20)
    w2bd = jnp.zeros((1500, OUT_C), jnp.float32)
    for k in range(5):
        w2bd = w2bd.at[k * 300:(k + 1) * 300, k * 20:(k + 1) * 20].set(w2t)

    wtT = wt.T.astype(jnp.float32)                               # (1024, 1500)
    w1T = w1.T.astype(jnp.float32)                               # (1500, 1500)
    w_eff = jnp.dot(jnp.dot(wtT, w1T, precision=hi), w2bd, precision=hi)       # (1024, 100)
    b_eff = jnp.dot(jnp.dot(bt.astype(jnp.float32), w1T, precision=hi)
                    + b1.astype(jnp.float32), w2bd, precision=hi)               # (100,)

    # Transposed weight so the kernel consumes channel-major (NCHW) input.
    w_effT = w_eff.T.astype(jnp.bfloat16)                        # (100, 1024)
    b_eff = b_eff.reshape(OUT_C, 1).astype(jnp.float32)          # (100, 1)
    return w_effT, b_eff


@jax.jit
def san_forward(x_nchw, prepared):
    w_effT, b_eff = prepared
    B, C, H, W = x_nchw.shape
    # The module's view(-1, 300) / view(-1, 14, 14, 100) pin these sizes.
    assert C == IN_C and H == 14 and W == 14, "SAN forward requires (B, 1024, 14, 14)"
    hw = H * W

    # Free reshape (trailing-dim merge): NCHW consumed directly, no transpose.
    x = x_nchw.reshape(B, C, hw)

    out = pl.pallas_call(
        san_kernel,
        out_shape=jax.ShapeDtypeStruct((B, OUT_C, hw), jnp.float32),
        grid_spec=pltpu.PrefetchScalarGridSpec(
            num_scalar_prefetch=0,
            grid=(B,),
            in_specs=[
                # per-batch channel-major slab; leading batch dim squeezed
                pl.BlockSpec((None, C, hw), lambda b: (b, 0, 0)),
                # folded weight / bias: grid-invariant (loaded once, resident)
                pl.BlockSpec((OUT_C, C), lambda b: (0, 0)),
                pl.BlockSpec((OUT_C, 1), lambda b: (0, 0)),
            ],
            out_specs=pl.BlockSpec((None, OUT_C, hw), lambda b: (b, 0, 0)),
        ),
        compiler_params=pltpu.CompilerParams(
            # Batch tiles are independent -> shard across v7x's 2 TensorCores
            # (grid length == B, so keep B >= 2 on v7x for full utilization).
            dimension_semantics=("parallel",),
        ),
    )(x, w_effT, b_eff)

    # Output is already NCHW-ordered; only a free trailing-dim reshape remains.
    return out.reshape(B, OUT_C, H, W)


def san_reference(x_nchw, params):
    """Pure-JAX reference matching the PyTorch module (high-precision matmuls)."""
    wt, bt, w1, b1, w2 = params
    hi = lax.Precision.HIGHEST
    B = x_nchw.shape[0]
    x = jnp.transpose(x_nchw, (0, 2, 3, 1))                      # NHWC
    x = jnp.dot(x, wt.T, precision=hi) + bt                      # (B,14,14,1500)
    x = jnp.dot(x, w1.T, precision=hi) + b1                      # (B,14,14,1500)
    x = jnp.dot(x.reshape(-1, 300), w2.T, precision=hi)          # (B*14*14*5, 20)
    x = x.reshape(B, 14, 14, 100)
    return jnp.transpose(x, (0, 3, 1, 2))                        # (B,100,14,14)


def init_params(key):
    k1, k2, k3, k4, k5 = jax.random.split(key, 5)
    wt = 0.02 * jax.random.normal(k1, (1500, 1024), jnp.float32)  # transform.weight
    bt = 0.02 * jax.random.normal(k2, (1500,), jnp.float32)       # transform.bias
    w1 = 0.02 * jax.random.normal(k3, (1500, 1500), jnp.float32)  # fc1.weight
    b1 = 0.02 * jax.random.normal(k4, (1500,), jnp.float32)       # fc1.bias
    w2 = 0.02 * jax.random.normal(k5, (20, 300), jnp.float32)     # fc2.weight (no bias)
    return wt, bt, w1, b1, w2


if __name__ == "__main__":
    key = jax.random.PRNGKey(0)
    kp, kx = jax.random.split(key)
    params = init_params(kp)
    prepared = prepare_params(params)          # one-time weight folding (hoisted)

    # Module's view ops pin C=1024, H=W=14; batch kept small (>=2 for v7x).
    x = jax.random.normal(kx, (2, 1024, 14, 14), jnp.float32)

    out = jax.block_until_ready(san_forward(x, prepared))
    assert out.shape == (2, 100, 14, 14), out.shape

    ref = jax.block_until_ready(san_reference(x, params))
    err = float(jnp.max(jnp.abs(out - ref)))
    assert err < 1e-2, err

    print("KERNEL_OK")
</pallas_src>

<mosaic_0001>
module attributes {stable_mosaic.version = 11 : i64} {
  func.func @san_kernel(%arg0: i32, %arg1: memref<1x1024x196xf32, #tpu.memory_space<vmem>>, %arg2: memref<100x1024xbf16, #tpu.memory_space<vmem>>, %arg3: memref<100x1xf32, #tpu.memory_space<vmem>>, %arg4: memref<1x100x196xf32, #tpu.memory_space<vmem>>) attributes {dimension_semantics = [#tpu.dimension_semantics<parallel>], iteration_bounds = array<i64: 2>, scalar_prefetch = 0 : i64, scratch_operands = 0 : i64, tpu.core_type = #tpu.core_type<tc>, window_params = [{transform_indices = @transform_0, window_bounds = array<i64: 1, 1024, 196>}, {pipeline_mode = #tpu.pipeline_mode<synchronous>, transform_indices = @transform_1, window_bounds = array<i64: 100, 1024>}, {pipeline_mode = #tpu.pipeline_mode<synchronous>, transform_indices = @transform_2, window_bounds = array<i64: 100, 1>}, {transform_indices = @transform_3, window_bounds = array<i64: 1, 100, 196>}]} {
    %c0 = arith.constant 0 : index
    %c0_0 = arith.constant 0 : index
    %c0_1 = arith.constant 0 : index
    %0 = vector.load %arg1[%c0, %c0_0, %c0_1] : memref<1x1024x196xf32, #tpu.memory_space<vmem>>, vector<1x1024x196xf32>
    %1 = vector.shape_cast %0 : vector<1x1024x196xf32> to vector<1024x196xf32>
    %2 = arith.truncf %1 : vector<1024x196xf32> to vector<1024x196xbf16>
    %c0_2 = arith.constant 0 : index
    %c0_3 = arith.constant 0 : index
    %3 = vector.load %arg2[%c0_2, %c0_3] : memref<100x1024xbf16, #tpu.memory_space<vmem>>, vector<100x1024xbf16>
    %cst = arith.constant dense<0.000000e+00> : vector<100x196xf32>
    %4 = tpu.matmul %3, %2, %cst {dimension_numbers = #tpu.dot_dimension_numbers<[1], [0], [0], [1], [0, 0, 1, 1], [], []>} : vector<100x1024xbf16>, vector<1024x196xbf16>, vector<100x196xf32> -> vector<100x196xf32>
    %c0_4 = arith.constant 0 : index
    %c0_5 = arith.constant 0 : index
    %5 = vector.load %arg3[%c0_4, %c0_5] : memref<100x1xf32, #tpu.memory_space<vmem>>, vector<100x1xf32>
    %6 = vector.broadcast %5 : vector<100x1xf32> to vector<100x196xf32>
    %7 = arith.addf %4, %6 : vector<100x196xf32>
    %c0_6 = arith.constant 0 : index
    %c0_7 = arith.constant 0 : index
    %c0_8 = arith.constant 0 : index
    %8 = vector.load %arg4[%c0_6, %c0_7, %c0_8] : memref<1x100x196xf32, #tpu.memory_space<vmem>>, vector<1x100x196xf32>
    %9 = vector.shape_cast %8 : vector<1x100x196xf32> to vector<100x196xf32>
    %10 = vector.shape_cast %7 : vector<100x196xf32> to vector<1x100x196xf32>
    tpu.vector_store %arg4[%c0_6, %c0_7, %c0_8], %10 {strides = array<i32>} : memref<1x100x196xf32, #tpu.memory_space<vmem>>, vector<1x100x196xf32>,
    return
  }
  func.func @transform_0(%arg0: i32) -> (i32, i32, i32) {
    %c0_i32 = arith.constant 0 : i32
    %c0_i32_0 = arith.constant 0 : i32
    %c0_i32_1 = arith.constant 0 : i32
    return %arg0, %c0_i32, %c0_i32_0 : i32, i32, i32
  }
  func.func @transform_1(%arg0: i32) -> (i32, i32) {
    %c0_i32 = arith.constant 0 : i32
    %c0_i32_0 = arith.constant 0 : i32
    %c0_i32_1 = arith.constant 0 : i32
    return %c0_i32, %c0_i32_0 : i32, i32
  }
  func.func @transform_2(%arg0: i32) -> (i32, i32) {
    %c0_i32 = arith.constant 0 : i32
    %c0_i32_0 = arith.constant 0 : i32
    %c0_i32_1 = arith.constant 0 : i32
    return %c0_i32, %c0_i32_0 : i32, i32
  }
  func.func @transform_3(%arg0: i32) -> (i32, i32, i32) {
    %c0_i32 = arith.constant 0 : i32
    %c0_i32_0 = arith.constant 0 : i32
    %c0_i32_1 = arith.constant 0 : i32
    return %arg0, %c0_i32, %c0_i32_0 : i32, i32, i32
  }
}

</mosaic_0001>

<llo_original>
// kernel: san_forward.1
$region0: #{san_forward.1}
  #allocation0 [shape = 'u32[]', space=smem, size = 0x4, offset = 0x4, fixed_abs, tag = 'smem constant byte address 0x4 - core index']
  #allocation1 [shape = 'u32[72,128]{1,0:T(1,128)}', space=vmem, size = 0x9000, scoped, tag = 'internal scratch']
  %s0 = inlined_call_operand.vmem [shape: f32[2,1024,196], index: 0, kind: input, shape index: {}]
  %s1 = inlined_call_operand.vmem [shape: bf16[100,1024], index: 1, kind: input, shape index: {}]
  %s2 = inlined_call_operand.vmem [shape: f32[100,1], index: 2, kind: input, shape index: {}]
  %s3 = inlined_call_operand.vmem [shape: f32[2,100,196], index: 3, kind: output, shape index: {}]
  %s4 = sld [smem:[#allocation0]]
  $region45: #{san_forward.1} parent=0
    _
  %s6 = ssub.s32 1, %s4
  %s7 = scalar_select 0, %s6, %s4
  loop: start=0, step=1, limit=4
  $region2: #{san_forward.1} parent=0 // loop_pre_header
    _
  $region3: #{san_forward.1} parent=0 // loop_header
    %s9 = sphi 0, %s13
    %p10 = scmp.ge.s32.totalorder %s9, 4
    %s19 = sphi 0, %s21
    %s22 = sphi 0, %s19
    %s23 = sphi 0, %s22
    %s39 = sphi 0, %s23
    %s43 = sphi 0, %s43
    %s45 = sphi 0, %s43
    %s46 = sphi 0, %s45
    %s60 = sphi 0, %s46
    %s64 = sphi 0, %s64
    %s66 = sphi 0, %s64
    %s67 = sphi 0, %s66
    %s81 = sphi 0, %s67
    %s87 = sphi 0, %s89
    %s90 = sphi 0, %s87
    %s91 = sphi 0, %s90
    %s107 = sphi 0, %s91
  $region4: #{san_forward.1} parent=0 // loop_header_branch
    %12 = sbr.rel (%p10) target = $region8
  $region5: #{san_forward.1} parent=0 // loop_body
    %s14 = ssub.s32 %s9, 1
    %s15 = ssub.s32 %s9, 2
    %s16 = sadd.s32 %s9, 1
    %s17 = ssub.s32 %s9, %s16
    %p18 = scmp.eq.s32.totalorder %s17, 0
    %s20 = sadd.s32 %s19, 1
    %s21 = scalar_select %p18, %s19, %s20
    %p24 = pneg %p18
    %p25 = scmp.eq.s32.totalorder %s9, 1
    %p26 = por %p24, %p25
    %p27 = scmp.ne.s32.totalorder %s19, %s22
    %p28 = scmp.eq.s32.totalorder %s9, 0
    %p29 = por %p27, %p28
    %p30 = scmp.ne.s32.totalorder %s19, %s22
    %p31 = scmp.eq.s32.totalorder %s14, 1
    %p32 = por %p30, %p31
    %p33 = scmp.ne.s32.totalorder %s22, %s23
    %p34 = scmp.eq.s32.totalorder %s14, 0
    %p35 = por %p33, %p34
    %p36 = scmp.ne.s32.totalorder %s22, %s23
    %p37 = scmp.eq.s32.totalorder %s15, 1
    %p38 = por %p36, %p37
    %p40 = scmp.ne.s32.totalorder %s23, %s39
    %p41 = scmp.eq.s32.totalorder %s15, 0
    %p42 = por %p40, %p41
    %s44 = sadd.s32 %s43, 1
    %p47 = scmp.eq.s32.totalorder %s9, 1
    %p48 = scmp.ne.s32.totalorder %s43, %s45
    %p49 = scmp.eq.s32.totalorder %s9, 0
    %p50 = por %p48, %p49
    %p51 = scmp.ne.s32.totalorder %s43, %s45
    %p52 = scmp.eq.s32.totalorder %s14, 1
    %p53 = por %p51, %p52
    %p54 = scmp.ne.s32.totalorder %s45, %s46
    %p55 = scmp.eq.s32.totalorder %s14, 0
    %p56 = por %p54, %p55
    %p57 = scmp.ne.s32.totalorder %s45, %s46
    %p58 = scmp.eq.s32.totalorder %s15, 1
    %p59 = por %p57, %p58
    %p61 = scmp.ne.s32.totalorder %s46, %s60
    %p62 = scmp.eq.s32.totalorder %s15, 0
    %p63 = por %p61, %p62
    %s65 = sadd.s32 %s64, 1
    %p68 = scmp.eq.s32.totalorder %s9, 1
    %p69 = scmp.ne.s32.totalorder %s64, %s66
    %p70 = scmp.eq.s32.totalorder %s9, 0
    %p71 = por %p69, %p70
    %p72 = scmp.ne.s32.totalorder %s64, %s66
    %p73 = scmp.eq.s32.totalorder %s14, 1
    %p74 = por %p72, %p73
    %p75 = scmp.ne.s32.totalorder %s66, %s67
    %p76 = scmp.eq.s32.totalorder %s14, 0
    %p77 = por %p75, %p76
    %p78 = scmp.ne.s32.totalorder %s66, %s67
    %p79 = scmp.eq.s32.totalorder %s15, 1
    %p80 = por %p78, %p79
    %p82 = scmp.ne.s32.totalorder %s67, %s81
    %p83 = scmp.eq.s32.totalorder %s15, 0
    %p84 = por %p82, %p83
    %s85 = ssub.s32 %s9, %s16
    %p86 = scmp.eq.s32.totalorder %s85, 0
    %s88 = sadd.s32 %s87, 1
    %s89 = scalar_select %p86, %s87, %s88
    %p92 = pneg %p86
    %p93 = scmp.eq.s32.totalorder %s9, 1
    %p94 = por %p92, %p93
    %p95 = scmp.ne.s32.totalorder %s87, %s90
    %p96 = scmp.eq.s32.totalorder %s9, 0
    %p97 = por %p95, %p96
    %p98 = scmp.ne.s32.totalorder %s87, %s90
    %p99 = scmp.eq.s32.totalorder %s14, 1
    %p100 = por %p98, %p99
    %p101 = scmp.ne.s32.totalorder %s90, %s91
    %p102 = scmp.eq.s32.totalorder %s14, 0
    %p103 = por %p101, %p102
    %p104 = scmp.ne.s32.totalorder %s90, %s91
    %p105 = scmp.eq.s32.totalorder %s15, 1
    %p106 = por %p104, %p105
    %p108 = scmp.ne.s32.totalorder %s91, %s107
    %p109 = scmp.eq.s32.totalorder %s15, 0
    %p110 = por %p108, %p109
    %p111 = scmp.le.s32.totalorder 1, %s9
    %p112 = scmp.lt.s32.totalorder %s9, 3
    %p113 = pnand %p111, %p112
    %p114 = pneg %p113
    // Predicated region
    $region9: #{san_forward.1} parent=5 // pred_check
      _
    $region10: #{san_forward.1} parent=5 // pred_check_branch
      %116 = sbr.rel (%p113) target = $region12
    $region11: #{san_forward.1} parent=5 // pred_region
      %s117 = ssub.s32 %s9, 1
      // Predicated region
      $region13: #{san_forward.1} parent=11 // pred_check
        %p118 = pneg %p56
      $region14: #{san_forward.1} parent=11 // pred_check_branch
        %120 = sbr.rel (%p118) target = $region16
      $region15: #{san_forward.1} parent=11 // pred_region
        _
      $region16: #{san_forward.1} parent=11 // pred_fallthru
        _
      // Predicated region
      $region17: #{san_forward.1} parent=11 // pred_check
        %p121 = pneg %p77
      $region18: #{san_forward.1} parent=11 // pred_check_branch
        %123 = sbr.rel (%p121) target = $region20
      $region19: #{san_forward.1} parent=11 // pred_region
        _
      $region20: #{san_forward.1} parent=11 // pred_fallthru
        _
    $region12: #{san_forward.1} parent=5 // pred_fallthru
      _
    %p124 = scmp.lt.s32.totalorder %s9, 2
    // Predicated region
    $region21: #{san_forward.1} parent=5 // pred_check
      %p125 = pneg %p124
    $region22: #{san_forward.1} parent=5 // pred_check_branch
      %127 = sbr.rel (%p125) target = $region24
    $region23: #{san_forward.1} parent=5 // pred_region
      // Predicated region
      $region25: #{san_forward.1} parent=23 // pred_check
        %p128 = pneg %p29
      $region26: #{san_forward.1} parent=23 // pred_check_branch
        %130 = sbr.rel (%p128) target = $region28
      $region27: #{san_forward.1} parent=23 // pred_region
        %p131 = scmp.lt.s32.totalorder %s9, 1
        %s132 = scalar_select %p131, %s9, 1
        %s133 = smul.addr %s132, 256
        %s134 = smul.addr %s133, 8
        %s135 = scalar_lea.vmem %s0, %s134
      $region28: #{san_forward.1} parent=23 // pred_fallthru
        _
    $region24: #{san_forward.1} parent=5 // pred_fallthru
      _
    %p136 = scmp.le.s32.totalorder 1, %s9
    %p137 = scmp.lt.s32.totalorder %s9, 3
    %p138 = pnand %p136, %p137
    %p139 = pneg %p138
    // Predicated region
    $region29: #{san_forward.1} parent=5 // pred_check
      _
    $region30: #{san_forward.1} parent=5 // pred_check_branch
      %141 = sbr.rel (%p138) target = $region32
    $region31: #{san_forward.1} parent=5 // pred_region
      %s142 = ssub.s32 %s9, 1
      %p143 = scmp.lt.s32.totalorder %s14, 1
      %s144 = scalar_select %p143, %s14, 1
      %s145 = smul.addr %s144, 256
      %s146 = smul.addr %s145, 8
      %s147 = scalar_lea.vmem %s0, %s146
      %p148 = pneg %p35
      %p149 = pneg %p32
      %p150 = pneg %p56
      %p151 = pneg %p53
      %p152 = pneg %p77
      %p153 = pneg %p74
      %p154 = pneg %p103
      %p155 = pneg %p100
      %p156 = scmp.lt.s32.totalorder %s14, 1
      %s157 = scalar_select %p156, %s14, 1
      %s158 = smul.addr %s157, 26
      %s159 = smul.addr %s158, 8
      %s160 = scalar_lea.vmem %s3, %s159
      %p161 = scmp.lt.s32.totalorder %s14, 1
      %s162 = scalar_select %p161, %s14, 1
      %s163 = smul.addr %s162, 256
      %s164 = smul.addr %s163, 8
      %s165 = scalar_lea.vmem %s0, %s164
      %p166 = scmp.lt.s32.totalorder %s14, 1
      %s167 = scalar_select %p166, %s14, 1
      %s168 = smul.addr %s167, 26
      %s169 = smul.addr %s168, 8
      %s170 = scalar_lea.vmem %s3, %s169
      %v171 = vld [vmem:[%s165] sm:$0xff]
      %v172 = vld [vmem:[%s165 + $0x8] sm:$0xff]
      %v173 = vld [vmem:[%s165 + $0x10] sm:$0xff]
      %v174 = vld [vmem:[%s165 + $0x18] sm:$0xff]
      %v175 = vld [vmem:[%s165 + $0x20] sm:$0xff]
      %v176 = vld [vmem:[%s165 + $0x28] sm:$0xff]
      %v177 = vld [vmem:[%s165 + $0x30] sm:$0xff]
      %v178 = vld [vmem:[%s165 + $0x38] sm:$0xff]
      %v179 = vld [vmem:[%s165 + $0x40] sm:$0xff]
      %v180 = vld [vmem:[%s165 + $0x48] sm:$0xff]
      %v181 = vld [vmem:[%s165 + $0x50] sm:$0xff]
      %v182 = vld [vmem:[%s165 + $0x58] sm:$0xff]
      %v183 = vld [vmem:[%s165 + $0x60] sm:$0xff]
      %v184 = vld [vmem:[%s165 + $0x68] sm:$0xff]
      %v185 = vld [vmem:[%s165 + $0x70] sm:$0xff]
      %v186 = vld [vmem:[%s165 + $0x78] sm:$0xff]
      %v187 = vld [vmem:[%s165 + $0x80] sm:$0xff]
      %v188 = vld [vmem:[%s165 + $0x88] sm:$0xff]
      %v189 = vld [vmem:[%s165 + $0x90] sm:$0xff]
      %v190 = vld [vmem:[%s165 + $0x98] sm:$0xff]
      %v191 = vld [vmem:[%s165 + $0xa0] sm:$0xff]
      %v192 = vld [vmem:[%s165 + $0xa8] sm:$0xff]
      %v193 = vld [vmem:[%s165 + $0xb0] sm:$0xff]
      %v194 = vld [vmem:[%s165 + $0xb8] sm:$0xff]
      %v195 = vld [vmem:[%s165 + $0xc0] sm:$0xff]
      %v196 = vld [vmem:[%s165 + $0xc8] sm:$0xff]
      %v197 = vld [vmem:[%s165 + $0xd0] sm:$0xff]
      %v198 = vld [vmem:[%s165 + $0xd8] sm:$0xff]
      %v199 = vld [vmem:[%s165 + $0xe0] sm:$0xff]
      %v200 = vld [vmem:[%s165 + $0xe8] sm:$0xff]
      %v201 = vld [vmem:[%s165 + $0xf0] sm:$0xff]
      %v202 = vld [vmem:[%s165 + $0xf8] sm:$0xff]
      %v203 = vld [vmem:[%s165 + $0x100] sm:$0xff]
      %v204 = vld [vmem:[%s165 + $0x108] sm:$0xff]
      %v205 = vld [vmem:[%s165 + $0x110] sm:$0xff]
      %v206 = vld [vmem:[%s165 + $0x118] sm:$0xff]
      %v207 = vld [vmem:[%s165 + $0x120] sm:$0xff]
      %v208 = vld [vmem:[%s165 + $0x128] sm:$0xff]
      %v209 = vld [vmem:[%s165 + $0x130] sm:$0xff]
      %v210 = vld [vmem:[%s165 + $0x138] sm:$0xff]
      %v211 = vld [vmem:[%s165 + $0x140] sm:$0xff]
      %v212 = vld [vmem:[%s165 + $0x148] sm:$0xff]
      %v213 = vld [vmem:[%s165 + $0x150] sm:$0xff]
      %v214 = vld [vmem:[%s165 + $0x158] sm:$0xff]
      %v215 = vld [vmem:[%s165 + $0x160] sm:$0xff]
      %v216 = vld [vmem:[%s165 + $0x168] sm:$0xff]
      %v217 = vld [vmem:[%s165 + $0x170] sm:$0xff]
      %v218 = vld [vmem:[%s165 + $0x178] sm:$0xff]
      %v219 = vld [vmem:[%s165 + $0x180] sm:$0xff]
      %v220 = vld [vmem:[%s165 + $0x188] sm:$0xff]
      %v221 = vld [vmem:[%s165 + $0x190] sm:$0xff]
      %v222 = vld [vmem:[%s165 + $0x198] sm:$0xff]
      %v223 = vld [vmem:[%s165 + $0x1a0] sm:$0xff]
      %v224 = vld [vmem:[%s165 + $0x1a8] sm:$0xff]
      %v225 = vld [vmem:[%s165 + $0x1b0] sm:$0xff]
      %v226 = vld [vmem:[%s165 + $0x1b8] sm:$0xff]
      %v227 = vld [vmem:[%s165 + $0x1c0] sm:$0xff]
      %v228 = vld [vmem:[%s165 + $0x1c8] sm:$0xff]
      %v229 = vld [vmem:[%s165 + $0x1d0] sm:$0xff]
      %v230 = vld [vmem:[%s165 + $0x1d8] sm:$0xff]
      %v231 = vld [vmem:[%s165 + $0x1e0] sm:$0xff]
      %v232 = vld [vmem:[%s165 + $0x1e8] sm:$0xff]
      %v233 = vld [vmem:[%s165 + $0x1f0] sm:$0xff]
      %v234 = vld [vmem:[%s165 + $0x1f8] sm:$0xff]
      %v235 = vld [vmem:[%s165 + $0x200] sm:$0xff]
      %v236 = vld [vmem:[%s165 + $0x208] sm:$0xff]
      %v237 = vld [vmem:[%s165 + $0x210] sm:$0xff]
      %v238 = vld [vmem:[%s165 + $0x218] sm:$0xff]
      %v239 = vld [vmem:[%s165 + $0x220] sm:$0xff]
      %v240 = vld [vmem:[%s165 + $0x228] sm:$0xff]
      %v241 = vld [vmem:[%s165 + $0x230] sm:$0xff]
      %v242 = vld [vmem:[%s165 + $0x238] sm:$0xff]
      %v243 = vld [vmem:[%s165 + $0x240] sm:$0xff]
      %v244 = vld [vmem:[%s165 + $0x248] sm:$0xff]
      %v245 = vld [vmem:[%s165 + $0x250] sm:$0xff]
      %v246 = vld [vmem:[%s165 + $0x258] sm:$0xff]
      %v247 = vld [vmem:[%s165 + $0x260] sm:$0xff]
      %v248 = vld [vmem:[%s165 + $0x268] sm:$0xff]
      %v249 = vld [vmem:[%s165 + $0x270] sm:$0xff]
      %v250 = vld [vmem:[%s165 + $0x278] sm:$0xff]
      %v251 = vld [vmem:[%s165 + $0x280] sm:$0xff]
      %v252 = vld [vmem:[%s165 + $0x288] sm:$0xff]
      %v253 = vld [vmem:[%s165 + $0x290] sm:$0xff]
      %v254 = vld [vmem:[%s165 + $0x298] sm:$0xff]
      %v255 = vld [vmem:[%s165 + $0x2a0] sm:$0xff]
      %v256 = vld [vmem:[%s165 + $0x2a8] sm:$0xff]
      %v257 = vld [vmem:[%s165 + $0x2b0] sm:$0xff]
      %v258 = vld [vmem:[%s165 + $0x2b8] sm:$0xff]
      %v259 = vld [vmem:[%s165 + $0x2c0] sm:$0xff]
      %v260 = vld [vmem:[%s165 + $0x2c8] sm:$0xff]
      %v261 = vld [vmem:[%s165 + $0x2d0] sm:$0xff]
      %v262 = vld [vmem:[%s165 + $0x2d8] sm:$0xff]
      %v263 = vld [vmem:[%s165 + $0x2e0] sm:$0xff]
      %v264 = vld [vmem:[%s165 + $0x2e8] sm:$0xff]
      %v265 = vld [vmem:[%s165 + $0x2f0] sm:$0xff]
      %v266 = vld [vmem:[%s165 + $0x2f8] sm:$0xff]
      %v267 = vld [vmem:[%s165 + $0x300] sm:$0xff]
      %v268 = vld [vmem:[%s165 + $0x308] sm:$0xff]
      %v269 = vld [vmem:[%s165 + $0x310] sm:$0xff]
      %v270 = vld [vmem:[%s165 + $0x318] sm:$0xff]
      %v271 = vld [vmem:[%s165 + $0x320] sm:$0xff]
      %v272 = vld [vmem:[%s165 + $0x328] sm:$0xff]
      %v273 = vld [vmem:[%s165 + $0x330] sm:$0xff]
      %v274 = vld [vmem:[%s165 + $0x338] sm:$0xff]
      %v275 = vld [vmem:[%s165 + $0x340] sm:$0xff]
      %v276 = vld [vmem:[%s165 + $0x348] sm:$0xff]
      %v277 = vld [vmem:[%s165 + $0x350] sm:$0xff]
      %v278 = vld [vmem:[%s165 + $0x358] sm:$0xff]
      %v279 = vld [vmem:[%s165 + $0x360] sm:$0xff]
      %v280 = vld [vmem:[%s165 + $0x368] sm:$0xff]
      %v281 = vld [vmem:[%s165 + $0x370] sm:$0xff]
      %v282 = vld [vmem:[%s165 + $0x378] sm:$0xff]
      %v283 = vld [vmem:[%s165 + $0x380] sm:$0xff]
      %v284 = vld [vmem:[%s165 + $0x388] sm:$0xff]
      %v285 = vld [vmem:[%s165 + $0x390] sm:$0xff]
      %v286 = vld [vmem:[%s165 + $0x398] sm:$0xff]
      %v287 = vld [vmem:[%s165 + $0x3a0] sm:$0xff]
      %v288 = vld [vmem:[%s165 + $0x3a8] sm:$0xff]
      %v289 = vld [vmem:[%s165 + $0x3b0] sm:$0xff]
      %v290 = vld [vmem:[%s165 + $0x3b8] sm:$0xff]
      %v291 = vld [vmem:[%s165 + $0x3c0] sm:$0xff]
      %v292 = vld [vmem:[%s165 + $0x3c8] sm:$0xff]
      %v293 = vld [vmem:[%s165 + $0x3d0] sm:$0xff]
      %v294 = vld [vmem:[%s165 + $0x3d8] sm:$0xff]
      %v295 = vld [vmem:[%s165 + $0x3e0] sm:$0xff]
      %v296 = vld [vmem:[%s165 + $0x3e8] sm:$0xff]
      %v297 = vld [vmem:[%s165 + $0x3f0] sm:$0xff]
      %v298 = vld [vmem:[%s165 + $0x3f8] sm:$0xff]
      %v299 = vld [vmem:[%s165 + $0x400] sm:$0xff]
      %v300 = vld [vmem:[%s165 + $0x408] sm:$0xff]
      %v301 = vld [vmem:[%s165 + $0x410] sm:$0xff]
      %v302 = vld [vmem:[%s165 + $0x418] sm:$0xff]
      %v303 = vld [vmem:[%s165 + $0x420] sm:$0xff]
      %v304 = vld [vmem:[%s165 + $0x428] sm:$0xff]
      %v305 = vld [vmem:[%s165 + $0x430] sm:$0xff]
      %v306 = vld [vmem:[%s165 + $0x438] sm:$0xff]
      %v307 = vld [vmem:[%s165 + $0x440] sm:$0xff]
      %v308 = vld [vmem:[%s165 + $0x448] sm:$0xff]
      %v309 = vld [vmem:[%s165 + $0x450] sm:$0xff]
      %v310 = vld [vmem:[%s165 + $0x458] sm:$0xff]
      %v311 = vld [vmem:[%s165 + $0x460] sm:$0xff]
      %v312 = vld [vmem:[%s165 + $0x468] sm:$0xff]
      %v313 = vld [vmem:[%s165 + $0x470] sm:$0xff]
      %v314 = vld [vmem:[%s165 + $0x478] sm:$0xff]
      %v315 = vld [vmem:[%s165 + $0x480] sm:$0xff]
      %v316 = vld [vmem:[%s165 + $0x488] sm:$0xff]
      %v317 = vld [vmem:[%s165 + $0x490] sm:$0xff]
      %v318 = vld [vmem:[%s165 + $0x498] sm:$0xff]
      %v319 = vld [vmem:[%s165 + $0x4a0] sm:$0xff]
      %v320 = vld [vmem:[%s165 + $0x4a8] sm:$0xff]
      %v321 = vld [vmem:[%s165 + $0x4b0] sm:$0xff]
      %v322 = vld [vmem:[%s165 + $0x4b8] sm:$0xff]
      %v323 = vld [vmem:[%s165 + $0x4c0] sm:$0xff]
      %v324 = vld [vmem:[%s165 + $0x4c8] sm:$0xff]
      %v325 = vld [vmem:[%s165 + $0x4d0] sm:$0xff]
      %v326 = vld [vmem:[%s165 + $0x4d8] sm:$0xff]
      %v327 = vld [vmem:[%s165 + $0x4e0] sm:$0xff]
      %v328 = vld [vmem:[%s165 + $0x4e8] sm:$0xff]
      %v329 = vld [vmem:[%s165 + $0x4f0] sm:$0xff]
      %v330 = vld [vmem:[%s165 + $0x4f8] sm:$0xff]
      %v331 = vld [vmem:[%s165 + $0x500] sm:$0xff]
      %v332 = vld [vmem:[%s165 + $0x508] sm:$0xff]
      %v333 = vld [vmem:[%s165 + $0x510] sm:$0xff]
      %v334 = vld [vmem:[%s165 + $0x518] sm:$0xff]
      %v335 = vld [vmem:[%s165 + $0x520] sm:$0xff]
      %v336 = vld [vmem:[%s165 + $0x528] sm:$0xff]
      %v337 = vld [vmem:[%s165 + $0x530] sm:$0xff]
      %v338 = vld [vmem:[%s165 + $0x538] sm:$0xff]
      %v339 = vld [vmem:[%s165 + $0x540] sm:$0xff]
      %v340 = vld [vmem:[%s165 + $0x548] sm:$0xff]
      %v341 = vld [vmem:[%s165 + $0x550] sm:$0xff]
      %v342 = vld [vmem:[%s165 + $0x558] sm:$0xff]
      %v343 = vld [vmem:[%s165 + $0x560] sm:$0xff]
      %v344 = vld [vmem:[%s165 + $0x568] sm:$0xff]
      %v345 = vld [vmem:[%s165 + $0x570] sm:$0xff]
      %v346 = vld [vmem:[%s165 + $0x578] sm:$0xff]
      %v347 = vld [vmem:[%s165 + $0x580] sm:$0xff]
      %v348 = vld [vmem:[%s165 + $0x588] sm:$0xff]
      %v349 = vld [vmem:[%s165 + $0x590] sm:$0xff]
      %v350 = vld [vmem:[%s165 + $0x598] sm:$0xff]
      %v351 = vld [vmem:[%s165 + $0x5a0] sm:$0xff]
      %v352 = vld [vmem:[%s165 + $0x5a8] sm:$0xff]
      %v353 = vld [vmem:[%s165 + $0x5b0] sm:$0xff]
      %v354 = vld [vmem:[%s165 + $0x5b8] sm:$0xff]
      %v355 = vld [vmem:[%s165 + $0x5c0] sm:$0xff]
      %v356 = vld [vmem:[%s165 + $0x5c8] sm:$0xff]
      %v357 = vld [vmem:[%s165 + $0x5d0] sm:$0xff]
      %v358 = vld [vmem:[%s165 + $0x5d8] sm:$0xff]
      %v359 = vld [vmem:[%s165 + $0x5e0] sm:$0xff]
      %v360 = vld [vmem:[%s165 + $0x5e8] sm:$0xff]
      %v361 = vld [vmem:[%s165 + $0x5f0] sm:$0xff]
      %v362 = vld [vmem:[%s165 + $0x5f8] sm:$0xff]
      %v363 = vld [vmem:[%s165 + $0x600] sm:$0xff]
      %v364 = vld [vmem:[%s165 + $0x608] sm:$0xff]
      %v365 = vld [vmem:[%s165 + $0x610] sm:$0xff]
      %v366 = vld [vmem:[%s165 + $0x618] sm:$0xff]
      %v367 = vld [vmem:[%s165 + $0x620] sm:$0xff]
      %v368 = vld [vmem:[%s165 + $0x628] sm:$0xff]
      %v369 = vld [vmem:[%s165 + $0x630] sm:$0xff]
      %v370 = vld [vmem:[%s165 + $0x638] sm:$0xff]
      %v371 = vld [vmem:[%s165 + $0x640] sm:$0xff]
      %v372 = vld [vmem:[%s165 + $0x648] sm:$0xff]
      %v373 = vld [vmem:[%s165 + $0x650] sm:$0xff]
      %v374 = vld [vmem:[%s165 + $0x658] sm:$0xff]
      %v375 = vld [vmem:[%s165 + $0x660] sm:$0xff]
      %v376 = vld [vmem:[%s165 + $0x668] sm:$0xff]
      %v377 = vld [vmem:[%s165 + $0x670] sm:$0xff]
      %v378 = vld [vmem:[%s165 + $0x678] sm:$0xff]
      %v379 = vld [vmem:[%s165 + $0x680] sm:$0xff]
      %v380 = vld [vmem:[%s165 + $0x688] sm:$0xff]
      %v381 = vld [vmem:[%s165 + $0x690] sm:$0xff]
      %v382 = vld [vmem:[%s165 + $0x698] sm:$0xff]
      %v383 = vld [vmem:[%s165 + $0x6a0] sm:$0xff]
      %v384 = vld [vmem:[%s165 + $0x6a8] sm:$0xff]
      %v385 = vld [vmem:[%s165 + $0x6b0] sm:$0xff]
      %v386 = vld [vmem:[%s165 + $0x6b8] sm:$0xff]
      %v387 = vld [vmem:[%s165 + $0x6c0] sm:$0xff]
      %v388 = vld [vmem:[%s165 + $0x6c8] sm:$0xff]
      %v389 = vld [vmem:[%s165 + $0x6d0] sm:$0xff]
      %v390 = vld [vmem:[%s165 + $0x6d8] sm:$0xff]
      %v391 = vld [vmem:[%s165 + $0x6e0] sm:$0xff]
      %v392 = vld [vmem:[%s165 + $0x6e8] sm:$0xff]
      %v393 = vld [vmem:[%s165 + $0x6f0] sm:$0xff]
      %v394 = vld [vmem:[%s165 + $0x6f8] sm:$0xff]
      %v395 = vld [vmem:[%s165 + $0x700] sm:$0xff]
      %v396 = vld [vmem:[%s165 + $0x708] sm:$0xff]
      %v397 = vld [vmem:[%s165 + $0x710] sm:$0xff]
      %v398 = vld [vmem:[%s165 + $0x718] sm:$0xff]
      %v399 = vld [vmem:[%s165 + $0x720] sm:$0xff]
      %v400 = vld [vmem:[%s165 + $0x728] sm:$0xff]
      %v401 = vld [vmem:[%s165 + $0x730] sm:$0xff]
      %v402 = vld [vmem:[%s165 + $0x738] sm:$0xff]
      %v403 = vld [vmem:[%s165 + $0x740] sm:$0xff]
      %v404 = vld [vmem:[%s165 + $0x748] sm:$0xff]
      %v405 = vld [vmem:[%s165 + $0x750] sm:$0xff]
      %v406 = vld [vmem:[%s165 + $0x758] sm:$0xff]
      %v407 = vld [vmem:[%s165 + $0x760] sm:$0xff]
      %v408 = vld [vmem:[%s165 + $0x768] sm:$0xff]
      %v409 = vld [vmem:[%s165 + $0x770] sm:$0xff]
      %v410 = vld [vmem:[%s165 + $0x778] sm:$0xff]
      %v411 = vld [vmem:[%s165 + $0x780] sm:$0xff]
      %v412 = vld [vmem:[%s165 + $0x788] sm:$0xff]
      %v413 = vld [vmem:[%s165 + $0x790] sm:$0xff]
      %v414 = vld [vmem:[%s165 + $0x798] sm:$0xff]
      %v415 = vld [vmem:[%s165 + $0x7a0] sm:$0xff]
      %v416 = vld [vmem:[%s165 + $0x7a8] sm:$0xff]
      %v417 = vld [vmem:[%s165 + $0x7b0] sm:$0xff]
      %v418 = vld [vmem:[%s165 + $0x7b8] sm:$0xff]
      %v419 = vld [vmem:[%s165 + $0x7c0] sm:$0xff]
      %v420 = vld [vmem:[%s165 + $0x7c8] sm:$0xff]
      %v421 = vld [vmem:[%s165 + $0x7d0] sm:$0xff]
      %v422 = vld [vmem:[%s165 + $0x7d8] sm:$0xff]
      %v423 = vld [vmem:[%s165 + $0x7e0] sm:$0xff]
      %v424 = vld [vmem:[%s165 + $0x7e8] sm:$0xff]
      %v425 = vld [vmem:[%s165 + $0x7f0] sm:$0xff]
      %v426 = vld [vmem:[%s165 + $0x7f8] sm:$0xff]
      %v427 = vpack.c.bf16 %v173, %v171
      %v428 = vpack.c.bf16 %v174, %v172
      %v429 = vpack.c.bf16 %v177, %v175
      %v430 = vpack.c.bf16 %v178, %v176
      %v431 = vpack.c.bf16 %v181, %v179
      %v432 = vpack.c.bf16 %v182, %v180
      %v433 = vpack.c.bf16 %v185, %v183
      %v434 = vpack.c.bf16 %v186, %v184
      %v435 = vpack.c.bf16 %v189, %v187
      %v436 = vpack.c.bf16 %v190, %v188
      %v437 = vpack.c.bf16 %v193, %v191
      %v438 = vpack.c.bf16 %v194, %v192
      %v439 = vpack.c.bf16 %v197, %v195
      %v440 = vpack.c.bf16 %v198, %v196
      %v441 = vpack.c.bf16 %v201, %v199
      %v442 = vpack.c.bf16 %v202, %v200
      %v443 = vpack.c.bf16 %v205, %v203
      %v444 = vpack.c.bf16 %v206, %v204
      %v445 = vpack.c.bf16 %v209, %v207
      %v446 = vpack.c.bf16 %v210, %v208
      %v447 = vpack.c.bf16 %v213, %v211
      %v448 = vpack.c.bf16 %v214, %v212
      %v449 = vpack.c.bf16 %v217, %v215
      %v450 = vpack.c.bf16 %v218, %v216
      %v451 = vpack.c.bf16 %v221, %v219
      %v452 = vpack.c.bf16 %v222, %v220
      %v453 = vpack.c.bf16 %v225, %v223
      %v454 = vpack.c.bf16 %v226, %v224
      %v455 = vpack.c.bf16 %v229, %v227
      %v456 = vpack.c.bf16 %v230, %v228
      %v457 = vpack.c.bf16 %v233, %v231
      %v458 = vpack.c.bf16 %v234, %v232
      %v459 = vpack.c.bf16 %v237, %v235
      %v460 = vpack.c.bf16 %v238, %v236
      %v461 = vpack.c.bf16 %v241, %v239
      %v462 = vpack.c.bf16 %v242, %v240
      %v463 = vpack.c.bf16 %v245, %v243
      %v464 = vpack.c.bf16 %v246, %v244
      %v465 = vpack.c.bf16 %v249, %v247
      %v466 = vpack.c.bf16 %v250, %v248
      %v467 = vpack.c.bf16 %v253, %v251
      %v468 = vpack.c.bf16 %v254, %v252
      %v469 = vpack.c.bf16 %v257, %v255
      %v470 = vpack.c.bf16 %v258, %v256
      %v471 = vpack.c.bf16 %v261, %v259
      %v472 = vpack.c.bf16 %v262, %v260
      %v473 = vpack.c.bf16 %v265, %v263
      %v474 = vpack.c.bf16 %v266, %v264
      %v475 = vpack.c.bf16 %v269, %v267
      %v476 = vpack.c.bf16 %v270, %v268
      %v477 = vpack.c.bf16 %v273, %v271
      %v478 = vpack.c.bf16 %v274, %v272
      %v479 = vpack.c.bf16 %v277, %v275
      %v480 = vpack.c.bf16 %v278, %v276
      %v481 = vpack.c.bf16 %v281, %v279
      %v482 = vpack.c.bf16 %v282, %v280
      %v483 = vpack.c.bf16 %v285, %v283
      %v484 = vpack.c.bf16 %v286, %v284
      %v485 = vpack.c.bf16 %v289, %v287
      %v486 = vpack.c.bf16 %v290, %v288
      %v487 = vpack.c.bf16 %v293, %v291
      %v488 = vpack.c.bf16 %v294, %v292
      %v489 = vpack.c.bf16 %v297, %v295
      %v490 = vpack.c.bf16 %v298, %v296
      %v491 = vpack.c.bf16 %v301, %v299
      %v492 = vpack.c.bf16 %v302, %v300
      %v493 = vpack.c.bf16 %v305, %v303
      %v494 = vpack.c.bf16 %v306, %v304
      %v495 = vpack.c.bf16 %v309, %v307
      %v496 = vpack.c.bf16 %v310, %v308
      %v497 = vpack.c.bf16 %v313, %v311
      %v498 = vpack.c.bf16 %v314, %v312
      %v499 = vpack.c.bf16 %v317, %v315
      %v500 = vpack.c.bf16 %v318, %v316
      %v501 = vpack.c.bf16 %v321, %v319
      %v502 = vpack.c.bf16 %v322, %v320
      %v503 = vpack.c.bf16 %v325, %v323
      %v504 = vpack.c.bf16 %v326, %v324
      %v505 = vpack.c.bf16 %v329, %v327
      %v506 = vpack.c.bf16 %v330, %v328
      %v507 = vpack.c.bf16 %v333, %v331
      %v508 = vpack.c.bf16 %v334, %v332
      %v509 = vpack.c.bf16 %v337, %v335
      %v510 = vpack.c.bf16 %v338, %v336
      %v511 = vpack.c.bf16 %v341, %v339
      %v512 = vpack.c.bf16 %v342, %v340
      %v513 = vpack.c.bf16 %v345, %v343
      %v514 = vpack.c.bf16 %v346, %v344
      %v515 = vpack.c.bf16 %v349, %v347
      %v516 = vpack.c.bf16 %v350, %v348
      %v517 = vpack.c.bf16 %v353, %v351
      %v518 = vpack.c.bf16 %v354, %v352
      %v519 = vpack.c.bf16 %v357, %v355
      %v520 = vpack.c.bf16 %v358, %v356
      %v521 = vpack.c.bf16 %v361, %v359
      %v522 = vpack.c.bf16 %v362, %v360
      %v523 = vpack.c.bf16 %v365, %v363
      %v524 = vpack.c.bf16 %v366, %v364
      %v525 = vpack.c.bf16 %v369, %v367
      %v526 = vpack.c.bf16 %v370, %v368
      %v527 = vpack.c.bf16 %v373, %v371
      %v528 = vpack.c.bf16 %v374, %v372
      %v529 = vpack.c.bf16 %v377, %v375
      %v530 = vpack.c.bf16 %v378, %v376
      %v531 = vpack.c.bf16 %v381, %v379
      %v532 = vpack.c.bf16 %v382, %v380
      %v533 = vpack.c.bf16 %v385, %v383
      %v534 = vpack.c.bf16 %v386, %v384
      %v535 = vpack.c.bf16 %v389, %v387
      %v536 = vpack.c.bf16 %v390, %v388
      %v537 = vpack.c.bf16 %v393, %v391
      %v538 = vpack.c.bf16 %v394, %v392
      %v539 = vpack.c.bf16 %v397, %v395
      %v540 = vpack.c.bf16 %v398, %v396
      %v541 = vpack.c.bf16 %v401, %v399
      %v542 = vpack.c.bf16 %v402, %v400
      %v543 = vpack.c.bf16 %v405, %v403
      %v544 = vpack.c.bf16 %v406, %v404
      %v545 = vpack.c.bf16 %v409, %v407
      %v546 = vpack.c.bf16 %v410, %v408
      %v547 = vpack.c.bf16 %v413, %v411
      %v548 = vpack.c.bf16 %v414, %v412
      %v549 = vpack.c.bf16 %v417, %v415
      %v550 = vpack.c.bf16 %v418, %v416
      %v551 = vpack.c.bf16 %v421, %v419
      %v552 = vpack.c.bf16 %v422, %v420
      %v553 = vpack.c.bf16 %v425, %v423
      %v554 = vpack.c.bf16 %v426, %v424
      %v555 = vld [vmem:[%s1] sm:$0xff]
      %v556 = vld [vmem:[%s1 + $0x8] sm:$0xff]
      %v557 = vld [vmem:[%s1 + $0x10] sm:$0xff]
      %v558 = vld [vmem:[%s1 + $0x18] sm:$0xff]
      %v559 = vld [vmem:[%s1 + $0x20] sm:$0xff]
      %v560 = vld [vmem:[%s1 + $0x28] sm:$0xff]
      %v561 = vld [vmem:[%s1 + $0x30] sm:$0xff]
      %v562 = vld [vmem:[%s1 + $0x38] sm:$0xff]
      %v563 = vld [vmem:[%s1 + $0x40] sm:$0xff]
      %v564 = vld [vmem:[%s1 + $0x48] sm:$0xff]
      %v565 = vld [vmem:[%s1 + $0x50] sm:$0xff]
      %v566 = vld [vmem:[%s1 + $0x58] sm:$0xff]
      %v567 = vld [vmem:[%s1 + $0x60] sm:$0xff]
      %v568 = vld [vmem:[%s1 + $0x68] sm:$0xff]
      %v569 = vld [vmem:[%s1 + $0x70] sm:$0xff]
      %v570 = vld [vmem:[%s1 + $0x78] sm:$0xff]
      %v571 = vld [vmem:[%s1 + $0x80] sm:$0xff]
      %v572 = vld [vmem:[%s1 + $0x88] sm:$0xff]
      %v573 = vld [vmem:[%s1 + $0x90] sm:$0xff]
      %v574 = vld [vmem:[%s1 + $0x98] sm:$0xff]
      %v575 = vld [vmem:[%s1 + $0xa0] sm:$0xff]
      %v576 = vld [vmem:[%s1 + $0xa8] sm:$0xff]
      %v577 = vld [vmem:[%s1 + $0xb0] sm:$0xff]
      %v578 = vld [vmem:[%s1 + $0xb8] sm:$0xff]
      %v579 = vld [vmem:[%s1 + $0xc0] sm:$0xff]
      %v580 = vld [vmem:[%s1 + $0xc8] sm:$0xff]
      %v581 = vld [vmem:[%s1 + $0xd0] sm:$0xff]
      %v582 = vld [vmem:[%s1 + $0xd8] sm:$0xff]
      %v583 = vld [vmem:[%s1 + $0xe0] sm:$0xff]
      %v584 = vld [vmem:[%s1 + $0xe8] sm:$0xff]
      %v585 = vld [vmem:[%s1 + $0xf0] sm:$0xff]
      %v586 = vld [vmem:[%s1 + $0xf8] sm:$0xff]
      %v587 = vld [vmem:[%s1 + $0x100] sm:$0xff]
      %v588 = vld [vmem:[%s1 + $0x108] sm:$0xff]
      %v589 = vld [vmem:[%s1 + $0x110] sm:$0xff]
      %v590 = vld [vmem:[%s1 + $0x118] sm:$0xff]
      %v591 = vld [vmem:[%s1 + $0x120] sm:$0xff]
      %v592 = vld [vmem:[%s1 + $0x128] sm:$0xff]
      %v593 = vld [vmem:[%s1 + $0x130] sm:$0xff]
      %v594 = vld [vmem:[%s1 + $0x138] sm:$0xff]
      %v595 = vld [vmem:[%s1 + $0x140] sm:$0xff]
      %v596 = vld [vmem:[%s1 + $0x148] sm:$0xff]
      %v597 = vld [vmem:[%s1 + $0x150] sm:$0xff]
      %v598 = vld [vmem:[%s1 + $0x158] sm:$0xff]
      %v599 = vld [vmem:[%s1 + $0x160] sm:$0xff]
      %v600 = vld [vmem:[%s1 + $0x168] sm:$0xff]
      %v601 = vld [vmem:[%s1 + $0x170] sm:$0xff]
      %v602 = vld [vmem:[%s1 + $0x178] sm:$0xff]
      %v603 = vld [vmem:[%s1 + $0x180] sm:$0x33]
      %v604 = vld [vmem:[%s1 + $0x188] sm:$0x33]
      %v605 = vld [vmem:[%s1 + $0x190] sm:$0x33]
      %v606 = vld [vmem:[%s1 + $0x198] sm:$0x33]
      %v607 = vld [vmem:[%s2] sm:$0xff]
      %v608 = vld [vmem:[%s2 + $0x8] sm:$0xff]
      %v609 = vld [vmem:[%s2 + $0x10] sm:$0xff]
      %v610 = vld [vmem:[%s2 + $0x18] sm:$0xff]
      %v611 = vld [vmem:[%s2 + $0x20] sm:$0xff]
      %v612 = vld [vmem:[%s2 + $0x28] sm:$0xff]
      %v613 = vld [vmem:[%s2 + $0x30] sm:$0xff]
      %v614 = vld [vmem:[%s2 + $0x38] sm:$0xff]
      %v615 = vld [vmem:[%s2 + $0x40] sm:$0xff]
      %v616 = vld [vmem:[%s2 + $0x48] sm:$0xff]
      %v617 = vld [vmem:[%s2 + $0x50] sm:$0xff]
      %v618 = vld [vmem:[%s2 + $0x58] sm:$0xff]
      %v619 = vld [vmem:[%s2 + $0x60] sm:$0xf]
      %621 = vset.pattern.permute.xlu0 0
      %622 = vperm.xlu0 %621, %v607
      %v623 = vpop.permute.xlu0 %622
      %626 = vset.pattern.permute.xlu0 0
      %627 = vperm.xlu0 %626, %v608
      %v628 = vpop.permute.xlu0 %627
      %631 = vset.pattern.permute.xlu0 0
      %632 = vperm.xlu0 %631, %v609
      %v633 = vpop.permute.xlu0 %632
      %636 = vset.pattern.permute.xlu0 0
      %637 = vperm.xlu0 %636, %v610
      %v638 = vpop.permute.xlu0 %637
      %641 = vset.pattern.permute.xlu0 0
      %642 = vperm.xlu0 %641, %v611
      %v643 = vpop.permute.xlu0 %642
      %646 = vset.pattern.permute.xlu0 0
      %647 = vperm.xlu0 %646, %v612
      %v648 = vpop.permute.xlu0 %647
      %651 = vset.pattern.permute.xlu0 0
      %652 = vperm.xlu0 %651, %v613
      %v653 = vpop.permute.xlu0 %652
      %656 = vset.pattern.permute.xlu0 0
      %657 = vperm.xlu0 %656, %v614
      %v658 = vpop.permute.xlu0 %657
      %661 = vset.pattern.permute.xlu0 0
      %662 = vperm.xlu0 %661, %v615
      %v663 = vpop.permute.xlu0 %662
      %666 = vset.pattern.permute.xlu0 0
      %667 = vperm.xlu0 %666, %v616
      %v668 = vpop.permute.xlu0 %667
      %671 = vset.pattern.permute.xlu0 0
      %672 = vperm.xlu0 %671, %v617
      %v673 = vpop.permute.xlu0 %672
      %676 = vset.pattern.permute.xlu0 0
      %677 = vperm.xlu0 %676, %v618
      %v678 = vpop.permute.xlu0 %677
      %681 = vset.pattern.permute.xlu0 0
      %682 = vperm.xlu0 %681, %v619
      %v683 = vpop.permute.xlu0 %682
      %v737 = vunpack.c.l.b16 %v555
      %v738 = vunpack.c.h.b16 %v555
      %v739 = vunpack.c.l.b16 %v556
      %v740 = vunpack.c.h.b16 %v556
      %v741 = vunpack.c.l.b16 %v557
      %v742 = vunpack.c.h.b16 %v557
      %v743 = vunpack.c.l.b16 %v558
      %v744 = vunpack.c.h.b16 %v558
      %v745 = vunpack.c.l.b16 %v559
      %v746 = vunpack.c.h.b16 %v559
      %v747 = vunpack.c.l.b16 %v560
      %v748 = vunpack.c.h.b16 %v560
      %v749 = vunpack.c.l.b16 %v561
      %v750 = vunpack.c.h.b16 %v561
      %v751 = vunpack.c.l.b16 %v562
      %v752 = vunpack.c.h.b16 %v562
      %v753 = vunpack.c.l.b16 %v563
      %v754 = vunpack.c.h.b16 %v563
      %v755 = vunpack.c.l.b16 %v564
      %v756 = vunpack.c.h.b16 %v564
      %v757 = vunpack.c.l.b16 %v565
      %v758 = vunpack.c.h.b16 %v565
      %v759 = vunpack.c.l.b16 %v566
      %v760 = vunpack.c.h.b16 %v566
      %v761 = vunpack.c.l.b16 %v567
      %v762 = vunpack.c.h.b16 %v567
      %v763 = vunpack.c.l.b16 %v568
      %v764 = vunpack.c.h.b16 %v568
      %v765 = vunpack.c.l.b16 %v569
      %v766 = vunpack.c.h.b16 %v569
      %v767 = vunpack.c.l.b16 %v570
      %v768 = vunpack.c.h.b16 %v570
      %v769 = vunpack.c.l.b16 %v571
      %v770 = vunpack.c.h.b16 %v571
      %v771 = vunpack.c.l.b16 %v572
      %v772 = vunpack.c.h.b16 %v572
      %v773 = vunpack.c.l.b16 %v573
      %v774 = vunpack.c.h.b16 %v573
      %v775 = vunpack.c.l.b16 %v574
      %v776 = vunpack.c.h.b16 %v574
      %v777 = vunpack.c.l.b16 %v575
      %v778 = vunpack.c.h.b16 %v575
      %v779 = vunpack.c.l.b16 %v576
      %v780 = vunpack.c.h.b16 %v576
      %v781 = vunpack.c.l.b16 %v577
      %v782 = vunpack.c.h.b16 %v577
      %v783 = vunpack.c.l.b16 %v578
      %v784 = vunpack.c.h.b16 %v578
      %v785 = vunpack.c.l.b16 %v579
      %v786 = vunpack.c.h.b16 %v579
      %v787 = vunpack.c.l.b16 %v580
      %v788 = vunpack.c.h.b16 %v580
      %v789 = vunpack.c.l.b16 %v581
      %v790 = vunpack.c.h.b16 %v581
      %v791 = vunpack.c.l.b16 %v582
      %v792 = vunpack.c.h.b16 %v582
      %v793 = vunpack.c.l.b16 %v583
      %v794 = vunpack.c.h.b16 %v583
      %v795 = vunpack.c.l.b16 %v584
      %v796 = vunpack.c.h.b16 %v584
      %v797 = vunpack.c.l.b16 %v585
      %v798 = vunpack.c.h.b16 %v585
      %v799 = vunpack.c.l.b16 %v586
      %v800 = vunpack.c.h.b16 %v586
      %v801 = vunpack.c.l.b16 %v587
      %v802 = vunpack.c.h.b16 %v587
      %v803 = vunpack.c.l.b16 %v588
      %v804 = vunpack.c.h.b16 %v588
      %v805 = vunpack.c.l.b16 %v589
      %v806 = vunpack.c.h.b16 %v589
      %v807 = vunpack.c.l.b16 %v590
      %v808 = vunpack.c.h.b16 %v590
      %v809 = vunpack.c.l.b16 %v591
      %v810 = vunpack.c.h.b16 %v591
      %v811 = vunpack.c.l.b16 %v592
      %v812 = vunpack.c.h.b16 %v592
      %v813 = vunpack.c.l.b16 %v593
      %v814 = vunpack.c.h.b16 %v593
      %v815 = vunpack.c.l.b16 %v594
      %v816 = vunpack.c.h.b16 %v594
      %v817 = vunpack.c.l.b16 %v595
      %v818 = vunpack.c.h.b16 %v595
      %v819 = vunpack.c.l.b16 %v596
      %v820 = vunpack.c.h.b16 %v596
      %v821 = vunpack.c.l.b16 %v597
      %v822 = vunpack.c.h.b16 %v597
      %v823 = vunpack.c.l.b16 %v598
      %v824 = vunpack.c.h.b16 %v598
      %v825 = vunpack.c.l.b16 %v599
      %v826 = vunpack.c.h.b16 %v599
      %v827 = vunpack.c.l.b16 %v600
      %v828 = vunpack.c.h.b16 %v600
      %v829 = vunpack.c.l.b16 %v601
      %v830 = vunpack.c.h.b16 %v601
      %v831 = vunpack.c.l.b16 %v602
      %v832 = vunpack.c.h.b16 %v602
      %v833 = vunpack.c.l.b16 %v603
      %v834 = vunpack.c.h.b16 %v603
      %v835 = vunpack.c.l.b16 %v604
      %v836 = vunpack.c.h.b16 %v604
      %v837 = vunpack.c.l.b16 %v605
      %v838 = vunpack.c.h.b16 %v605
      %v839 = vunpack.c.l.b16 %v606
      %v840 = vunpack.c.h.b16 %v606
      %v841 = vpack.c.b16 %v745, %v737
      %v842 = vpack.c.b16 %v746, %v738
      %v843 = vpack.c.b16 %v747, %v739
      %v844 = vpack.c.b16 %v748, %v740
      %v845 = vpack.c.b16 %v749, %v741
      %v846 = vpack.c.b16 %v750, %v742
      %v847 = vpack.c.b16 %v751, %v743
      %v848 = vpack.c.b16 %v752, %v744
      %v849 = vpack.c.b16 %v761, %v753
      %v850 = vpack.c.b16 %v762, %v754
      %v851 = vpack.c.b16 %v763, %v755
      %v852 = vpack.c.b16 %v764, %v756
      %v853 = vpack.c.b16 %v765, %v757
      %v854 = vpack.c.b16 %v766, %v758
      %v855 = vpack.c.b16 %v767, %v759
      %v856 = vpack.c.b16 %v768, %v760
      %v857 = vpack.c.b16 %v777, %v769
      %v858 = vpack.c.b16 %v778, %v770
      %v859 = vpack.c.b16 %v779, %v771
      %v860 = vpack.c.b16 %v780, %v772
      %v861 = vpack.c.b16 %v781, %v773
      %v862 = vpack.c.b16 %v782, %v774
      %v863 = vpack.c.b16 %v783, %v775
      %v864 = vpack.c.b16 %v784, %v776
      %v865 = vpack.c.b16 %v793, %v785
      %v866 = vpack.c.b16 %v794, %v786
      %v867 = vpack.c.b16 %v795, %v787
      %v868 = vpack.c.b16 %v796, %v788
      %v869 = vpack.c.b16 %v797, %v789
      %v870 = vpack.c.b16 %v798, %v790
      %v871 = vpack.c.b16 %v799, %v791
      %v872 = vpack.c.b16 %v800, %v792
      %v873 = vpack.c.b16 %v809, %v801
      %v874 = vpack.c.b16 %v810, %v802
      %v875 = vpack.c.b16 %v811, %v803
      %v876 = vpack.c.b16 %v812, %v804
      %v877 = vpack.c.b16 %v813, %v805
      %v878 = vpack.c.b16 %v814, %v806
      %v879 = vpack.c.b16 %v815, %v807
      %v880 = vpack.c.b16 %v816, %v808
      %v881 = vpack.c.b16 %v825, %v817
      %v882 = vpack.c.b16 %v826, %v818
      %v883 = vpack.c.b16 %v827, %v819
      %v884 = vpack.c.b16 %v828, %v820
      %v885 = vpack.c.b16 %v829, %v821
      %v886 = vpack.c.b16 %v830, %v822
      %v887 = vpack.c.b16 %v831, %v823
      %v888 = vpack.c.b16 %v832, %v824
      %v889 = vpack.c.b16 %v833, %v833
      %v890 = vpack.c.b16 %v834, %v834
      %v891 = vpack.c.b16 %v835, %v835
      %v892 = vpack.c.b16 %v836, %v836
      %v893 = vpack.c.b16 %v837, %v837
      %v894 = vpack.c.b16 %v838, %v838
      %v895 = vpack.c.b16 %v839, %v839
      %v896 = vpack.c.b16 %v840, %v840
      %953 = vmatpush.bf16.msra.mxu0 %v441
      %954 = vmatpush.bf16.msra.mxu0 %v439
      %955 = vmatpush.bf16.msra.mxu0 %v437
      %956 = vmatpush.bf16.msra.mxu0 %v435
      %957 = vmatpush.bf16.msra.mxu0 %v433
      %958 = vmatpush.bf16.msra.mxu0 %v431
      %959 = vmatpush.bf16.msra.mxu0 %v429
      %960 = vmatpush.bf16.msra.mxu0 %v427
      %961 = vmatmul.bf16.gmra.mxu0 %v841
      %v962 = vpop.f32.mrf.mxu0
      %v963 = vadd.f32 %v623, %v962
      %v964 = vpop.f32.mrf.mxu0
      %v965 = vadd.f32 %v628, %v964
      %966 = vmatmul.bf16.gmra.mxu0 %v849
      %v967 = vpop.f32.mrf.mxu0
      %v968 = vadd.f32 %v633, %v967
      %v969 = vpop.f32.mrf.mxu0
      %v970 = vadd.f32 %v638, %v969
      %971 = vmatmul.bf16.gmra.mxu0 %v857
      %v972 = vpop.f32.mrf.mxu0
      %v973 = vadd.f32 %v643, %v972
      %v974 = vpop.f32.mrf.mxu0
      %v975 = vadd.f32 %v648, %v974
      %976 = vmatmul.bf16.gmra.mxu0 %v865
      %v977 = vpop.f32.mrf.mxu0
      %v978 = vadd.f32 %v653, %v977
      %v979 = vpop.f32.mrf.mxu0
      %v980 = vadd.f32 %v658, %v979
      %981 = vmatmul.bf16.gmra.mxu0 %v873
      %v982 = vpop.f32.mrf.mxu0
      %v983 = vadd.f32 %v663, %v982
      %v984 = vpop.f32.mrf.mxu0
      %v985 = vadd.f32 %v668, %v984
      %986 = vmatmul.bf16.gmra.mxu0 %v881
      %v987 = vpop.f32.mrf.mxu0
      %v988 = vadd.f32 %v673, %v987
      %v989 = vpop.f32.mrf.mxu0
      %v990 = vadd.f32 %v678, %v989
      %991 = vmatmul.bf16.gmra.mxu0 %v889
      %v992 = vpop.f32.mrf.mxu0
      %v993 = vadd.f32 %v683, %v992
      %v994 = vpop.f32.mrf.mxu0
      %995 = vdwg.mxu0
      %996 = vmatpush.bf16.msra.mxu0 %v457
      %997 = vmatpush.bf16.msra.mxu0 %v455
      %998 = vmatpush.bf16.msra.mxu0 %v453
      %999 = vmatpush.bf16.msra.mxu0 %v451
      %1000 = vmatpush.bf16.msra.mxu0 %v449
      %1001 = vmatpush.bf16.msra.mxu0 %v447
      %1002 = vmatpush.bf16.msra.mxu0 %v445
      %1003 = vmatpush.bf16.msra.mxu0 %v443
      %1004 = vmatmul.bf16.gmra.mxu0 %v842
      %v1005 = vpop.f32.mrf.mxu0
      %v1006 = vadd.f32 %v963, %v1005
      %v1007 = vpop.f32.mrf.mxu0
      %v1008 = vadd.f32 %v965, %v1007
      %1009 = vmatmul.bf16.gmra.mxu0 %v850
      %v1010 = vpop.f32.mrf.mxu0
      %v1011 = vadd.f32 %v968, %v1010
      %v1012 = vpop.f32.mrf.mxu0
      %v1013 = vadd.f32 %v970, %v1012
      %1014 = vmatmul.bf16.gmra.mxu0 %v858
      %v1015 = vpop.f32.mrf.mxu0
      %v1016 = vadd.f32 %v973, %v1015
      %v1017 = vpop.f32.mrf.mxu0
      %v1018 = vadd.f32 %v975, %v1017
      %1019 = vmatmul.bf16.gmra.mxu0 %v866
      %v1020 = vpop.f32.mrf.mxu0
      %v1021 = vadd.f32 %v978, %v1020
      %v1022 = vpop.f32.mrf.mxu0
      %v1023 = vadd.f32 %v980, %v1022
      %1024 = vmatmul.bf16.gmra.mxu0 %v874
      %v1025 = vpop.f32.mrf.mxu0
      %v1026 = vadd.f32 %v983, %v1025
      %v1027 = vpop.f32.mrf.mxu0
      %v1028 = vadd.f32 %v985, %v1027
      %1029 = vmatmul.bf16.gmra.mxu0 %v882
      %v1030 = vpop.f32.mrf.mxu0
      %v1031 = vadd.f32 %v988, %v1030
      %v1032 = vpop.f32.mrf.mxu0
      %v1033 = vadd.f32 %v990, %v1032
      %1034 = vmatmul.bf16.gmra.mxu0 %v890
      %v1035 = vpop.f32.mrf.mxu0
      %v1036 = vadd.f32 %v993, %v1035
      %v1037 = vpop.f32.mrf.mxu0
      %1038 = vdwg.mxu0
      %1039 = vmatpush.bf16.msra.mxu0 %v473
      %1040 = vmatpush.bf16.msra.mxu0 %v471
      %1041 = vmatpush.bf16.msra.mxu0 %v469
      %1042 = vmatpush.bf16.msra.mxu0 %v467
      %1043 = vmatpush.bf16.msra.mxu0 %v465
      %1044 = vmatpush.bf16.msra.mxu0 %v463
      %1045 = vmatpush.bf16.msra.mxu0 %v461
      %1046 = vmatpush.bf16.msra.mxu0 %v459
      %1047 = vmatmul.bf16.gmra.mxu0 %v843
      %v1048 = vpop.f32.mrf.mxu0
      %v1049 = vadd.f32 %v1006, %v1048
      %v1050 = vpop.f32.mrf.mxu0
      %v1051 = vadd.f32 %v1008, %v1050
      %1052 = vmatmul.bf16.gmra.mxu0 %v851
      %v1053 = vpop.f32.mrf.mxu0
      %v1054 = vadd.f32 %v1011, %v1053
      %v1055 = vpop.f32.mrf.mxu0
      %v1056 = vadd.f32 %v1013, %v1055
      %1057 = vmatmul.bf16.gmra.mxu0 %v859
      %v1058 = vpop.f32.mrf.mxu0
      %v1059 = vadd.f32 %v1016, %v1058
      %v1060 = vpop.f32.mrf.mxu0
      %v1061 = vadd.f32 %v1018, %v1060
      %1062 = vmatmul.bf16.gmra.mxu0 %v867
      %v1063 = vpop.f32.mrf.mxu0
      %v1064 = vadd.f32 %v1021, %v1063
      %v1065 = vpop.f32.mrf.mxu0
      %v1066 = vadd.f32 %v1023, %v1065
      %1067 = vmatmul.bf16.gmra.mxu0 %v875
      %v1068 = vpop.f32.mrf.mxu0
      %v1069 = vadd.f32 %v1026, %v1068
      %v1070 = vpop.f32.mrf.mxu0
      %v1071 = vadd.f32 %v1028, %v1070
      %1072 = vmatmul.bf16.gmra.mxu0 %v883
      %v1073 = vpop.f32.mrf.mxu0
      %v1074 = vadd.f32 %v1031, %v1073
      %v1075 = vpop.f32.mrf.mxu0
      %v1076 = vadd.f32 %v1033, %v1075
      %1077 = vmatmul.bf16.gmra.mxu0 %v891
      %v1078 = vpop.f32.mrf.mxu0
      %v1079 = vadd.f32 %v1036, %v1078
      %v1080 = vpop.f32.mrf.mxu0
      %1081 = vdwg.mxu0
      %1082 = vmatpush.bf16.msra.mxu0 %v489
      %1083 = vmatpush.bf16.msra.mxu0 %v487
      %1084 = vmatpush.bf16.msra.mxu0 %v485
      %1085 = vmatpush.bf16.msra.mxu0 %v483
      %1086 = vmatpush.bf16.msra.mxu0 %v481
      %1087 = vmatpush.bf16.msra.mxu0 %v479
      %1088 = vmatpush.bf16.msra.mxu0 %v477
      %1089 = vmatpush.bf16.msra.mxu0 %v475
      %1090 = vmatmul.bf16.gmra.mxu0 %v844
      %v1091 = vpop.f32.mrf.mxu0
      %v1092 = vadd.f32 %v1049, %v1091
      %v1093 = vpop.f32.mrf.mxu0
      %v1094 = vadd.f32 %v1051, %v1093
      %1095 = vmatmul.bf16.gmra.mxu0 %v852
      %v1096 = vpop.f32.mrf.mxu0
      %v1097 = vadd.f32 %v1054, %v1096
      %v1098 = vpop.f32.mrf.mxu0
      %v1099 = vadd.f32 %v1056, %v1098
      %1100 = vmatmul.bf16.gmra.mxu0 %v860
      %v1101 = vpop.f32.mrf.mxu0
      %v1102 = vadd.f32 %v1059, %v1101
      %v1103 = vpop.f32.mrf.mxu0
      %v1104 = vadd.f32 %v1061, %v1103
      %1105 = vmatmul.bf16.gmra.mxu0 %v868
      %v1106 = vpop.f32.mrf.mxu0
      %v1107 = vadd.f32 %v1064, %v1106
      %v1108 = vpop.f32.mrf.mxu0
      %v1109 = vadd.f32 %v1066, %v1108
      %1110 = vmatmul.bf16.gmra.mxu0 %v876
      %v1111 = vpop.f32.mrf.mxu0
      %v1112 = vadd.f32 %v1069, %v1111
      %v1113 = vpop.f32.mrf.mxu0
      %v1114 = vadd.f32 %v1071, %v1113
      %1115 = vmatmul.bf16.gmra.mxu0 %v884
      %v1116 = vpop.f32.mrf.mxu0
      %v1117 = vadd.f32 %v1074, %v1116
      %v1118 = vpop.f32.mrf.mxu0
      %v1119 = vadd.f32 %v1076, %v1118
      %1120 = vmatmul.bf16.gmra.mxu0 %v892
      %v1121 = vpop.f32.mrf.mxu0
      %v1122 = vadd.f32 %v1079, %v1121
      %v1123 = vpop.f32.mrf.mxu0
      %1124 = vdwg.mxu0
      %1125 = vmatpush.bf16.msra.mxu0 %v505
      %1126 = vmatpush.bf16.msra.mxu0 %v503
      %1127 = vmatpush.bf16.msra.mxu0 %v501
      %1128 = vmatpush.bf16.msra.mxu0 %v499
      %1129 = vmatpush.bf16.msra.mxu0 %v497
      %1130 = vmatpush.bf16.msra.mxu0 %v495
      %1131 = vmatpush.bf16.msra.mxu0 %v493
      %1132 = vmatpush.bf16.msra.mxu0 %v491
      %1133 = vmatmul.bf16.gmra.mxu0 %v845
      %v1134 = vpop.f32.mrf.mxu0
      %v1135 = vadd.f32 %v1092, %v1134
      %v1136 = vpop.f32.mrf.mxu0
      %v1137 = vadd.f32 %v1094, %v1136
      %1138 = vmatmul.bf16.gmra.mxu0 %v853
      %v1139 = vpop.f32.mrf.mxu0
      %v1140 = vadd.f32 %v1097, %v1139
      %v1141 = vpop.f32.mrf.mxu0
      %v1142 = vadd.f32 %v1099, %v1141
      %1143 = vmatmul.bf16.gmra.mxu0 %v861
      %v1144 = vpop.f32.mrf.mxu0
      %v1145 = vadd.f32 %v1102, %v1144
      %v1146 = vpop.f32.mrf.mxu0
      %v1147 = vadd.f32 %v1104, %v1146
      %1148 = vmatmul.bf16.gmra.mxu0 %v869
      %v1149 = vpop.f32.mrf.mxu0
      %v1150 = vadd.f32 %v1107, %v1149
      %v1151 = vpop.f32.mrf.mxu0
      %v1152 = vadd.f32 %v1109, %v1151
      %1153 = vmatmul.bf16.gmra.mxu0 %v877
      %v1154 = vpop.f32.mrf.mxu0
      %v1155 = vadd.f32 %v1112, %v1154
      %v1156 = vpop.f32.mrf.mxu0
      %v1157 = vadd.f32 %v1114, %v1156
      %1158 = vmatmul.bf16.gmra.mxu0 %v885
      %v1159 = vpop.f32.mrf.mxu0
      %v1160 = vadd.f32 %v1117, %v1159
      %v1161 = vpop.f32.mrf.mxu0
      %v1162 = vadd.f32 %v1119, %v1161
      %1163 = vmatmul.bf16.gmra.mxu0 %v893
      %v1164 = vpop.f32.mrf.mxu0
      %v1165 = vadd.f32 %v1122, %v1164
      %v1166 = vpop.f32.mrf.mxu0
      %1167 = vdwg.mxu0
      %1168 = vmatpush.bf16.msra.mxu0 %v521
      %1169 = vmatpush.bf16.msra.mxu0 %v519
      %1170 = vmatpush.bf16.msra.mxu0 %v517
      %1171 = vmatpush.bf16.msra.mxu0 %v515
      %1172 = vmatpush.bf16.msra.mxu0 %v513
      %1173 = vmatpush.bf16.msra.mxu0 %v511
      %1174 = vmatpush.bf16.msra.mxu0 %v509
      %1175 = vmatpush.bf16.msra.mxu0 %v507
      %1176 = vmatmul.bf16.gmra.mxu0 %v846
      %v1177 = vpop.f32.mrf.mxu0
      %v1178 = vadd.f32 %v1135, %v1177
      %v1179 = vpop.f32.mrf.mxu0
      %v1180 = vadd.f32 %v1137, %v1179
      %1181 = vmatmul.bf16.gmra.mxu0 %v854
      %v1182 = vpop.f32.mrf.mxu0
      %v1183 = vadd.f32 %v1140, %v1182
      %v1184 = vpop.f32.mrf.mxu0
      %v1185 = vadd.f32 %v1142, %v1184
      %1186 = vmatmul.bf16.gmra.mxu0 %v862
      %v1187 = vpop.f32.mrf.mxu0
      %v1188 = vadd.f32 %v1145, %v1187
      %v1189 = vpop.f32.mrf.mxu0
      %v1190 = vadd.f32 %v1147, %v1189
      %1191 = vmatmul.bf16.gmra.mxu0 %v870
      %v1192 = vpop.f32.mrf.mxu0
      %v1193 = vadd.f32 %v1150, %v1192
      %v1194 = vpop.f32.mrf.mxu0
      %v1195 = vadd.f32 %v1152, %v1194
      %1196 = vmatmul.bf16.gmra.mxu0 %v878
      %v1197 = vpop.f32.mrf.mxu0
      %v1198 = vadd.f32 %v1155, %v1197
      %v1199 = vpop.f32.mrf.mxu0
      %v1200 = vadd.f32 %v1157, %v1199
      %1201 = vmatmul.bf16.gmra.mxu0 %v886
      %v1202 = vpop.f32.mrf.mxu0
      %v1203 = vadd.f32 %v1160, %v1202
      %v1204 = vpop.f32.mrf.mxu0
      %v1205 = vadd.f32 %v1162, %v1204
      %1206 = vmatmul.bf16.gmra.mxu0 %v894
      %v1207 = vpop.f32.mrf.mxu0
      %v1208 = vadd.f32 %v1165, %v1207
      %v1209 = vpop.f32.mrf.mxu0
      %1210 = vdwg.mxu0
      %1211 = vmatpush.bf16.msra.mxu0 %v537
      %1212 = vmatpush.bf16.msra.mxu0 %v535
      %1213 = vmatpush.bf16.msra.mxu0 %v533
      %1214 = vmatpush.bf16.msra.mxu0 %v531
      %1215 = vmatpush.bf16.msra.mxu0 %v529
      %1216 = vmatpush.bf16.msra.mxu0 %v527
      %1217 = vmatpush.bf16.msra.mxu0 %v525
      %1218 = vmatpush.bf16.msra.mxu0 %v523
      %1219 = vmatmul.bf16.gmra.mxu0 %v847
      %v1220 = vpop.f32.mrf.mxu0
      %v1221 = vadd.f32 %v1178, %v1220
      %v1222 = vpop.f32.mrf.mxu0
      %v1223 = vadd.f32 %v1180, %v1222
      %1224 = vmatmul.bf16.gmra.mxu0 %v855
      %v1225 = vpop.f32.mrf.mxu0
      %v1226 = vadd.f32 %v1183, %v1225
      %v1227 = vpop.f32.mrf.mxu0
      %v1228 = vadd.f32 %v1185, %v1227
      %1229 = vmatmul.bf16.gmra.mxu0 %v863
      %v1230 = vpop.f32.mrf.mxu0
      %v1231 = vadd.f32 %v1188, %v1230
      %v1232 = vpop.f32.mrf.mxu0
      %v1233 = vadd.f32 %v1190, %v1232
      %1234 = vmatmul.bf16.gmra.mxu0 %v871
      %v1235 = vpop.f32.mrf.mxu0
      %v1236 = vadd.f32 %v1193, %v1235
      %v1237 = vpop.f32.mrf.mxu0
      %v1238 = vadd.f32 %v1195, %v1237
      %1239 = vmatmul.bf16.gmra.mxu0 %v879
      %v1240 = vpop.f32.mrf.mxu0
      %v1241 = vadd.f32 %v1198, %v1240
      %v1242 = vpop.f32.mrf.mxu0
      %v1243 = vadd.f32 %v1200, %v1242
      %1244 = vmatmul.bf16.gmra.mxu0 %v887
      %v1245 = vpop.f32.mrf.mxu0
      %v1246 = vadd.f32 %v1203, %v1245
      %v1247 = vpop.f32.mrf.mxu0
      %v1248 = vadd.f32 %v1205, %v1247
      %1249 = vmatmul.bf16.gmra.mxu0 %v895
      %v1250 = vpop.f32.mrf.mxu0
      %v1251 = vadd.f32 %v1208, %v1250
      %v1252 = vpop.f32.mrf.mxu0
      %1253 = vdwg.mxu0
      %1254 = vmatpush.bf16.msra.mxu0 %v553
      %1255 = vmatpush.bf16.msra.mxu0 %v551
      %1256 = vmatpush.bf16.msra.mxu0 %v549
      %1257 = vmatpush.bf16.msra.mxu0 %v547
      %1258 = vmatpush.bf16.msra.mxu0 %v545
      %1259 = vmatpush.bf16.msra.mxu0 %v543
      %1260 = vmatpush.bf16.msra.mxu0 %v541
      %1261 = vmatpush.bf16.msra.mxu0 %v539
      %1262 = vmatmul.bf16.gmra.mxu0 %v848
      %v1263 = vpop.f32.mrf.mxu0
      %v1264 = vadd.f32 %v1221, %v1263
      %v1265 = vpop.f32.mrf.mxu0
      %v1266 = vadd.f32 %v1223, %v1265
      %1267 = vmatmul.bf16.gmra.mxu0 %v856
      %v1268 = vpop.f32.mrf.mxu0
      %v1269 = vadd.f32 %v1226, %v1268
      %v1270 = vpop.f32.mrf.mxu0
      %v1271 = vadd.f32 %v1228, %v1270
      %1272 = vmatmul.bf16.gmra.mxu0 %v864
      %v1273 = vpop.f32.mrf.mxu0
      %v1274 = vadd.f32 %v1231, %v1273
      %v1275 = vpop.f32.mrf.mxu0
      %v1276 = vadd.f32 %v1233, %v1275
      %1277 = vmatmul.bf16.gmra.mxu0 %v872
      %v1278 = vpop.f32.mrf.mxu0
      %v1279 = vadd.f32 %v1236, %v1278
      %v1280 = vpop.f32.mrf.mxu0
      %v1281 = vadd.f32 %v1238, %v1280
      %1282 = vmatmul.bf16.gmra.mxu0 %v880
      %v1283 = vpop.f32.mrf.mxu0
      %v1284 = vadd.f32 %v1241, %v1283
      %v1285 = vpop.f32.mrf.mxu0
      %v1286 = vadd.f32 %v1243, %v1285
      %1287 = vmatmul.bf16.gmra.mxu0 %v888
      %v1288 = vpop.f32.mrf.mxu0
      %v1289 = vadd.f32 %v1246, %v1288
      %v1290 = vpop.f32.mrf.mxu0
      %v1291 = vadd.f32 %v1248, %v1290
      %1292 = vmatmul.bf16.gmra.mxu0 %v896
      %v1293 = vpop.f32.mrf.mxu0
      %v1294 = vadd.f32 %v1251, %v1293
      %v1295 = vpop.f32.mrf.mxu0
      %1296 = vdwg.mxu0
      %1297 = vmatpush.bf16.msra.mxu0 %v442
      %1298 = vmatpush.bf16.msra.mxu0 %v440
      %1299 = vmatpush.bf16.msra.mxu0 %v438
      %1300 = vmatpush.bf16.msra.mxu0 %v436
      %1301 = vmatpush.bf16.msra.mxu0 %v434
      %1302 = vmatpush.bf16.msra.mxu0 %v432
      %1303 = vmatpush.bf16.msra.mxu0 %v430
      %1304 = vmatpush.bf16.msra.mxu0 %v428
      %1305 = vmatmul.bf16.gmra.mxu0 %v841
      %v1306 = vpop.f32.mrf.mxu0
      %v1307 = vadd.f32 %v623, %v1306
      %v1308 = vpop.f32.mrf.mxu0
      %v1309 = vadd.f32 %v628, %v1308
      %1310 = vmatmul.bf16.gmra.mxu0 %v849
      %v1311 = vpop.f32.mrf.mxu0
      %v1312 = vadd.f32 %v633, %v1311
      %v1313 = vpop.f32.mrf.mxu0
      %v1314 = vadd.f32 %v638, %v1313
      %1315 = vmatmul.bf16.gmra.mxu0 %v857
      %v1316 = vpop.f32.mrf.mxu0
      %v1317 = vadd.f32 %v643, %v1316
      %v1318 = vpop.f32.mrf.mxu0
      %v1319 = vadd.f32 %v648, %v1318
      %1320 = vmatmul.bf16.gmra.mxu0 %v865
      %v1321 = vpop.f32.mrf.mxu0
      %v1322 = vadd.f32 %v653, %v1321
      %v1323 = vpop.f32.mrf.mxu0
      %v1324 = vadd.f32 %v658, %v1323
      %1325 = vmatmul.bf16.gmra.mxu0 %v873
      %v1326 = vpop.f32.mrf.mxu0
      %v1327 = vadd.f32 %v663, %v1326
      %v1328 = vpop.f32.mrf.mxu0
      %v1329 = vadd.f32 %v668, %v1328
      %1330 = vmatmul.bf16.gmra.mxu0 %v881
      %v1331 = vpop.f32.mrf.mxu0
      %v1332 = vadd.f32 %v673, %v1331
      %v1333 = vpop.f32.mrf.mxu0
      %v1334 = vadd.f32 %v678, %v1333
      %1335 = vmatmul.bf16.gmra.mxu0 %v889
      %v1336 = vpop.f32.mrf.mxu0
      %v1337 = vadd.f32 %v683, %v1336
      %v1338 = vpop.f32.mrf.mxu0
      %1339 = vdwg.mxu0
      %1340 = vmatpush.bf16.msra.mxu0 %v458
      %1341 = vmatpush.bf16.msra.mxu0 %v456
      %1342 = vmatpush.bf16.msra.mxu0 %v454
      %1343 = vmatpush.bf16.msra.mxu0 %v452
      %1344 = vmatpush.bf16.msra.mxu0 %v450
      %1345 = vmatpush.bf16.msra.mxu0 %v448
      %1346 = vmatpush.bf16.msra.mxu0 %v446
      %1347 = vmatpush.bf16.msra.mxu0 %v444
      %1348 = vmatmul.bf16.gmra.mxu0 %v842
      %v1349 = vpop.f32.mrf.mxu0
      %v1350 = vadd.f32 %v1307, %v1349
      %v1351 = vpop.f32.mrf.mxu0
      %v1352 = vadd.f32 %v1309, %v1351
      %1353 = vmatmul.bf16.gmra.mxu0 %v850
      %v1354 = vpop.f32.mrf.mxu0
      %v1355 = vadd.f32 %v1312, %v1354
      %v1356 = vpop.f32.mrf.mxu0
      %v1357 = vadd.f32 %v1314, %v1356
      %1358 = vmatmul.bf16.gmra.mxu0 %v858
      %v1359 = vpop.f32.mrf.mxu0
      %v1360 = vadd.f32 %v1317, %v1359
      %v1361 = vpop.f32.mrf.mxu0
      %v1362 = vadd.f32 %v1319, %v1361
      %1363 = vmatmul.bf16.gmra.mxu0 %v866
      %v1364 = vpop.f32.mrf.mxu0
      %v1365 = vadd.f32 %v1322, %v1364
      %v1366 = vpop.f32.mrf.mxu0
      %v1367 = vadd.f32 %v1324, %v1366
      %1368 = vmatmul.bf16.gmra.mxu0 %v874
      %v1369 = vpop.f32.mrf.mxu0
      %v1370 = vadd.f32 %v1327, %v1369
      %v1371 = vpop.f32.mrf.mxu0
      %v1372 = vadd.f32 %v1329, %v1371
      %1373 = vmatmul.bf16.gmra.mxu0 %v882
      %v1374 = vpop.f32.mrf.mxu0
      %v1375 = vadd.f32 %v1332, %v1374
      %v1376 = vpop.f32.mrf.mxu0
      %v1377 = vadd.f32 %v1334, %v1376
      %1378 = vmatmul.bf16.gmra.mxu0 %v890
      %v1379 = vpop.f32.mrf.mxu0
      %v1380 = vadd.f32 %v1337, %v1379
      %v1381 = vpop.f32.mrf.mxu0
      %1382 = vdwg.mxu0
      %1383 = vmatpush.bf16.msra.mxu0 %v474
      %1384 = vmatpush.bf16.msra.mxu0 %v472
      %1385 = vmatpush.bf16.msra.mxu0 %v470
      %1386 = vmatpush.bf16.msra.mxu0 %v468
      %1387 = vmatpush.bf16.msra.mxu0 %v466
      %1388 = vmatpush.bf16.msra.mxu0 %v464
      %1389 = vmatpush.bf16.msra.mxu0 %v462
      %1390 = vmatpush.bf16.msra.mxu0 %v460
      %1391 = vmatmul.bf16.gmra.mxu0 %v843
      %v1392 = vpop.f32.mrf.mxu0
      %v1393 = vadd.f32 %v1350, %v1392
      %v1394 = vpop.f32.mrf.mxu0
      %v1395 = vadd.f32 %v1352, %v1394
      %1396 = vmatmul.bf16.gmra.mxu0 %v851
      %v1397 = vpop.f32.mrf.mxu0
      %v1398 = vadd.f32 %v1355, %v1397
      %v1399 = vpop.f32.mrf.mxu0
      %v1400 = vadd.f32 %v1357, %v1399
      %1401 = vmatmul.bf16.gmra.mxu0 %v859
      %v1402 = vpop.f32.mrf.mxu0
      %v1403 = vadd.f32 %v1360, %v1402
      %v1404 = vpop.f32.mrf.mxu0
      %v1405 = vadd.f32 %v1362, %v1404
      %1406 = vmatmul.bf16.gmra.mxu0 %v867
      %v1407 = vpop.f32.mrf.mxu0
      %v1408 = vadd.f32 %v1365, %v1407
      %v1409 = vpop.f32.mrf.mxu0
      %v1410 = vadd.f32 %v1367, %v1409
      %1411 = vmatmul.bf16.gmra.mxu0 %v875
      %v1412 = vpop.f32.mrf.mxu0
      %v1413 = vadd.f32 %v1370, %v1412
      %v1414 = vpop.f32.mrf.mxu0
      %v1415 = vadd.f32 %v1372, %v1414
      %1416 = vmatmul.bf16.gmra.mxu0 %v883
      %v1417 = vpop.f32.mrf.mxu0
      %v1418 = vadd.f32 %v1375, %v1417
      %v1419 = vpop.f32.mrf.mxu0
      %v1420 = vadd.f32 %v1377, %v1419
      %1421 = vmatmul.bf16.gmra.mxu0 %v891
      %v1422 = vpop.f32.mrf.mxu0
      %v1423 = vadd.f32 %v1380, %v1422
      %v1424 = vpop.f32.mrf.mxu0
      %1425 = vdwg.mxu0
      %1426 = vmatpush.bf16.msra.mxu0 %v490
      %1427 = vmatpush.bf16.msra.mxu0 %v488
      %1428 = vmatpush.bf16.msra.mxu0 %v486
      %1429 = vmatpush.bf16.msra.mxu0 %v484
      %1430 = vmatpush.bf16.msra.mxu0 %v482
      %1431 = vmatpush.bf16.msra.mxu0 %v480
      %1432 = vmatpush.bf16.msra.mxu0 %v478
      %1433 = vmatpush.bf16.msra.mxu0 %v476
      %1434 = vmatmul.bf16.gmra.mxu0 %v844
      %v1435 = vpop.f32.mrf.mxu0
      %v1436 = vadd.f32 %v1393, %v1435
      %v1437 = vpop.f32.mrf.mxu0
      %v1438 = vadd.f32 %v1395, %v1437
      %1439 = vmatmul.bf16.gmra.mxu0 %v852
      %v1440 = vpop.f32.mrf.mxu0
      %v1441 = vadd.f32 %v1398, %v1440
      %v1442 = vpop.f32.mrf.mxu0
      %v1443 = vadd.f32 %v1400, %v1442
      %1444 = vmatmul.bf16.gmra.mxu0 %v860
      %v1445 = vpop.f32.mrf.mxu0
      %v1446 = vadd.f32 %v1403, %v1445
      %v1447 = vpop.f32.mrf.mxu0
      %v1448 = vadd.f32 %v1405, %v1447
      %1449 = vmatmul.bf16.gmra.mxu0 %v868
      %v1450 = vpop.f32.mrf.mxu0
      %v1451 = vadd.f32 %v1408, %v1450
      %v1452 = vpop.f32.mrf.mxu0
      %v1453 = vadd.f32 %v1410, %v1452
      %1454 = vmatmul.bf16.gmra.mxu0 %v876
      %v1455 = vpop.f32.mrf.mxu0
      %v1456 = vadd.f32 %v1413, %v1455
      %v1457 = vpop.f32.mrf.mxu0
      %v1458 = vadd.f32 %v1415, %v1457
      %1459 = vmatmul.bf16.gmra.mxu0 %v884
      %v1460 = vpop.f32.mrf.mxu0
      %v1461 = vadd.f32 %v1418, %v1460
      %v1462 = vpop.f32.mrf.mxu0
      %v1463 = vadd.f32 %v1420, %v1462
      %1464 = vmatmul.bf16.gmra.mxu0 %v892
      %v1465 = vpop.f32.mrf.mxu0
      %v1466 = vadd.f32 %v1423, %v1465
      %v1467 = vpop.f32.mrf.mxu0
      %1468 = vdwg.mxu0
      %1469 = vmatpush.bf16.msra.mxu0 %v506
      %1470 = vmatpush.bf16.msra.mxu0 %v504
      %1471 = vmatpush.bf16.msra.mxu0 %v502
      %1472 = vmatpush.bf16.msra.mxu0 %v500
      %1473 = vmatpush.bf16.msra.mxu0 %v498
      %1474 = vmatpush.bf16.msra.mxu0 %v496
      %1475 = vmatpush.bf16.msra.mxu0 %v494
      %1476 = vmatpush.bf16.msra.mxu0 %v492
      %1477 = vmatmul.bf16.gmra.mxu0 %v845
      %v1478 = vpop.f32.mrf.mxu0
      %v1479 = vadd.f32 %v1436, %v1478
      %v1480 = vpop.f32.mrf.mxu0
      %v1481 = vadd.f32 %v1438, %v1480
      %1482 = vmatmul.bf16.gmra.mxu0 %v853
      %v1483 = vpop.f32.mrf.mxu0
      %v1484 = vadd.f32 %v1441, %v1483
      %v1485 = vpop.f32.mrf.mxu0
      %v1486 = vadd.f32 %v1443, %v1485
      %1487 = vmatmul.bf16.gmra.mxu0 %v861
      %v1488 = vpop.f32.mrf.mxu0
      %v1489 = vadd.f32 %v1446, %v1488
      %v1490 = vpop.f32.mrf.mxu0
      %v1491 = vadd.f32 %v1448, %v1490
      %1492 = vmatmul.bf16.gmra.mxu0 %v869
      %v1493 = vpop.f32.mrf.mxu0
      %v1494 = vadd.f32 %v1451, %v1493
      %v1495 = vpop.f32.mrf.mxu0
      %v1496 = vadd.f32 %v1453, %v1495
      %1497 = vmatmul.bf16.gmra.mxu0 %v877
      %v1498 = vpop.f32.mrf.mxu0
      %v1499 = vadd.f32 %v1456, %v1498
      %v1500 = vpop.f32.mrf.mxu0
      %v1501 = vadd.f32 %v1458, %v1500
      %1502 = vmatmul.bf16.gmra.mxu0 %v885
      %v1503 = vpop.f32.mrf.mxu0
      %v1504 = vadd.f32 %v1461, %v1503
      %v1505 = vpop.f32.mrf.mxu0
      %v1506 = vadd.f32 %v1463, %v1505
      %1507 = vmatmul.bf16.gmra.mxu0 %v893
      %v1508 = vpop.f32.mrf.mxu0
      %v1509 = vadd.f32 %v1466, %v1508
      %v1510 = vpop.f32.mrf.mxu0
      %1511 = vdwg.mxu0
      %1512 = vmatpush.bf16.msra.mxu0 %v522
      %1513 = vmatpush.bf16.msra.mxu0 %v520
      %1514 = vmatpush.bf16.msra.mxu0 %v518
      %1515 = vmatpush.bf16.msra.mxu0 %v516
      %1516 = vmatpush.bf16.msra.mxu0 %v514
      %1517 = vmatpush.bf16.msra.mxu0 %v512
      %1518 = vmatpush.bf16.msra.mxu0 %v510
      %1519 = vmatpush.bf16.msra.mxu0 %v508
      %1520 = vmatmul.bf16.gmra.mxu0 %v846
      %v1521 = vpop.f32.mrf.mxu0
      %v1522 = vadd.f32 %v1479, %v1521
      %v1523 = vpop.f32.mrf.mxu0
      %v1524 = vadd.f32 %v1481, %v1523
      %1525 = vmatmul.bf16.gmra.mxu0 %v854
      %v1526 = vpop.f32.mrf.mxu0
      %v1527 = vadd.f32 %v1484, %v1526
      %v1528 = vpop.f32.mrf.mxu0
      %v1529 = vadd.f32 %v1486, %v1528
      %1530 = vmatmul.bf16.gmra.mxu0 %v862
      %v1531 = vpop.f32.mrf.mxu0
      %v1532 = vadd.f32 %v1489, %v1531
      %v1533 = vpop.f32.mrf.mxu0
      %v1534 = vadd.f32 %v1491, %v1533
      %1535 = vmatmul.bf16.gmra.mxu0 %v870
      %v1536 = vpop.f32.mrf.mxu0
      %v1537 = vadd.f32 %v1494, %v1536
      %v1538 = vpop.f32.mrf.mxu0
      %v1539 = vadd.f32 %v1496, %v1538
      %1540 = vmatmul.bf16.gmra.mxu0 %v878
      %v1541 = vpop.f32.mrf.mxu0
      %v1542 = vadd.f32 %v1499, %v1541
      %v1543 = vpop.f32.mrf.mxu0
      %v1544 = vadd.f32 %v1501, %v1543
      %1545 = vmatmul.bf16.gmra.mxu0 %v886
      %v1546 = vpop.f32.mrf.mxu0
      %v1547 = vadd.f32 %v1504, %v1546
      %v1548 = vpop.f32.mrf.mxu0
      %v1549 = vadd.f32 %v1506, %v1548
      %1550 = vmatmul.bf16.gmra.mxu0 %v894
      %v1551 = vpop.f32.mrf.mxu0
      %v1552 = vadd.f32 %v1509, %v1551
      %v1553 = vpop.f32.mrf.mxu0
      %1554 = vdwg.mxu0
      %1555 = vmatpush.bf16.msra.mxu0 %v538
      %1556 = vmatpush.bf16.msra.mxu0 %v536
      %1557 = vmatpush.bf16.msra.mxu0 %v534
      %1558 = vmatpush.bf16.msra.mxu0 %v532
      %1559 = vmatpush.bf16.msra.mxu0 %v530
      %1560 = vmatpush.bf16.msra.mxu0 %v528
      %1561 = vmatpush.bf16.msra.mxu0 %v526
      %1562 = vmatpush.bf16.msra.mxu0 %v524
      %1563 = vmatmul.bf16.gmra.mxu0 %v847
      %v1564 = vpop.f32.mrf.mxu0
      %v1565 = vadd.f32 %v1522, %v1564
      %v1566 = vpop.f32.mrf.mxu0
      %v1567 = vadd.f32 %v1524, %v1566
      %1568 = vmatmul.bf16.gmra.mxu0 %v855
      %v1569 = vpop.f32.mrf.mxu0
      %v1570 = vadd.f32 %v1527, %v1569
      %v1571 = vpop.f32.mrf.mxu0
      %v1572 = vadd.f32 %v1529, %v1571
      %1573 = vmatmul.bf16.gmra.mxu0 %v863
      %v1574 = vpop.f32.mrf.mxu0
      %v1575 = vadd.f32 %v1532, %v1574
      %v1576 = vpop.f32.mrf.mxu0
      %v1577 = vadd.f32 %v1534, %v1576
      %1578 = vmatmul.bf16.gmra.mxu0 %v871
      %v1579 = vpop.f32.mrf.mxu0
      %v1580 = vadd.f32 %v1537, %v1579
      %v1581 = vpop.f32.mrf.mxu0
      %v1582 = vadd.f32 %v1539, %v1581
      %1583 = vmatmul.bf16.gmra.mxu0 %v879
      %v1584 = vpop.f32.mrf.mxu0
      %v1585 = vadd.f32 %v1542, %v1584
      %v1586 = vpop.f32.mrf.mxu0
      %v1587 = vadd.f32 %v1544, %v1586
      %1588 = vmatmul.bf16.gmra.mxu0 %v887
      %v1589 = vpop.f32.mrf.mxu0
      %v1590 = vadd.f32 %v1547, %v1589
      %v1591 = vpop.f32.mrf.mxu0
      %v1592 = vadd.f32 %v1549, %v1591
      %1593 = vmatmul.bf16.gmra.mxu0 %v895
      %v1594 = vpop.f32.mrf.mxu0
      %v1595 = vadd.f32 %v1552, %v1594
      %v1596 = vpop.f32.mrf.mxu0
      %1597 = vdwg.mxu0
      %1598 = vmatpush.bf16.msra.mxu0 %v554
      %1599 = vmatpush.bf16.msra.mxu0 %v552
      %1600 = vmatpush.bf16.msra.mxu0 %v550
      %1601 = vmatpush.bf16.msra.mxu0 %v548
      %1602 = vmatpush.bf16.msra.mxu0 %v546
      %1603 = vmatpush.bf16.msra.mxu0 %v544
      %1604 = vmatpush.bf16.msra.mxu0 %v542
      %1605 = vmatpush.bf16.msra.mxu0 %v540
      %1606 = vmatmul.bf16.gmra.mxu0 %v848
      %v1607 = vpop.f32.mrf.mxu0
      %v1608 = vadd.f32 %v1565, %v1607
      %v1609 = vpop.f32.mrf.mxu0
      %v1610 = vadd.f32 %v1567, %v1609
      %1611 = vmatmul.bf16.gmra.mxu0 %v856
      %v1612 = vpop.f32.mrf.mxu0
      %v1613 = vadd.f32 %v1570, %v1612
      %v1614 = vpop.f32.mrf.mxu0
      %v1615 = vadd.f32 %v1572, %v1614
      %1616 = vmatmul.bf16.gmra.mxu0 %v864
      %v1617 = vpop.f32.mrf.mxu0
      %v1618 = vadd.f32 %v1575, %v1617
      %v1619 = vpop.f32.mrf.mxu0
      %v1620 = vadd.f32 %v1577, %v1619
      %1621 = vmatmul.bf16.gmra.mxu0 %v872
      %v1622 = vpop.f32.mrf.mxu0
      %v1623 = vadd.f32 %v1580, %v1622
      %v1624 = vpop.f32.mrf.mxu0
      %v1625 = vadd.f32 %v1582, %v1624
      %1626 = vmatmul.bf16.gmra.mxu0 %v880
      %v1627 = vpop.f32.mrf.mxu0
      %v1628 = vadd.f32 %v1585, %v1627
      %v1629 = vpop.f32.mrf.mxu0
      %v1630 = vadd.f32 %v1587, %v1629
      %1631 = vmatmul.bf16.gmra.mxu0 %v888
      %v1632 = vpop.f32.mrf.mxu0
      %v1633 = vadd.f32 %v1590, %v1632
      %v1634 = vpop.f32.mrf.mxu0
      %v1635 = vadd.f32 %v1592, %v1634
      %1636 = vmatmul.bf16.gmra.mxu0 %v896
      %v1637 = vpop.f32.mrf.mxu0
      %v1638 = vadd.f32 %v1595, %v1637
      %v1639 = vpop.f32.mrf.mxu0
      %1640 = vdwg.mxu0
      %1641 = vst [vmem:[%s170] sm:$0xff] %v1264
      %vm1642 = vcmask 556032
      %1643 = vst.msk [vmem:[%s170 + $0x8] sm:$0xff] %vm1642, %v1608
      %1644 = vst [vmem:[%s170 + $0x10] sm:$0xff] %v1266
      %1645 = vst.msk [vmem:[%s170 + $0x18] sm:$0xff] %vm1642, %v1610
      %1646 = vst [vmem:[%s170 + $0x20] sm:$0xff] %v1269
      %1647 = vst.msk [vmem:[%s170 + $0x28] sm:$0xff] %vm1642, %v1613
      %1648 = vst [vmem:[%s170 + $0x30] sm:$0xff] %v1271
      %1649 = vst.msk [vmem:[%s170 + $0x38] sm:$0xff] %vm1642, %v1615
      %1650 = vst [vmem:[%s170 + $0x40] sm:$0xff] %v1274
      %1651 = vst.msk [vmem:[%s170 + $0x48] sm:$0xff] %vm1642, %v1618
      %1652 = vst [vmem:[%s170 + $0x50] sm:$0xff] %v1276
      %1653 = vst.msk [vmem:[%s170 + $0x58] sm:$0xff] %vm1642, %v1620
      %1654 = vst [vmem:[%s170 + $0x60] sm:$0xff] %v1279
      %1655 = vst.msk [vmem:[%s170 + $0x68] sm:$0xff] %vm1642, %v1623
      %1656 = vst [vmem:[%s170 + $0x70] sm:$0xff] %v1281
      %1657 = vst.msk [vmem:[%s170 + $0x78] sm:$0xff] %vm1642, %v1625
      %1658 = vst [vmem:[%s170 + $0x80] sm:$0xff] %v1284
      %1659 = vst.msk [vmem:[%s170 + $0x88] sm:$0xff] %vm1642, %v1628
      %1660 = vst [vmem:[%s170 + $0x90] sm:$0xff] %v1286
      %1661 = vst.msk [vmem:[%s170 + $0x98] sm:$0xff] %vm1642, %v1630
      %1662 = vst [vmem:[%s170 + $0xa0] sm:$0xff] %v1289
      %1663 = vst.msk [vmem:[%s170 + $0xa8] sm:$0xff] %vm1642, %v1633
      %1664 = vst [vmem:[%s170 + $0xb0] sm:$0xff] %v1291
      %1665 = vst.msk [vmem:[%s170 + $0xb8] sm:$0xff] %vm1642, %v1635
      %1666 = vst [vmem:[%s170 + $0xc0] sm:$0xf] %v1294
      %vm1667 = vcmask 551936
      %1668 = vst.msk [vmem:[%s170 + $0xc8] sm:$0xf] %vm1667, %v1638
      %p1669 = scmp.lt.s32.totalorder %s14, 1
      %s1670 = scalar_select %p1669, %s14, 1
      %s1671 = smul.addr %s1670, 26
      %s1672 = smul.addr %s1671, 8
      %s1673 = scalar_lea.vmem %s3, %s1672
      // Predicated region
      $region33: #{san_forward.1} parent=31 // pred_check
        %p1674 = pneg %p100
      $region34: #{san_forward.1} parent=31 // pred_check_branch
        %1676 = sbr.rel (%p1674) target = $region36
      $region35: #{san_forward.1} parent=31 // pred_region
        _
      $region36: #{san_forward.1} parent=31 // pred_fallthru
        _
    $region32: #{san_forward.1} parent=5 // pred_fallthru
      _
    %p1677 = scmp.le.s32.totalorder 2, %s9
    // Predicated region
    $region37: #{san_forward.1} parent=5 // pred_check
      %p1678 = pneg %p1677
    $region38: #{san_forward.1} parent=5 // pred_check_branch
      %1680 = sbr.rel (%p1678) target = $region40
    $region39: #{san_forward.1} parent=5 // pred_region
      %s1681 = ssub.s32 %s9, 2
      // Predicated region
      $region41: #{san_forward.1} parent=39 // pred_check
        %p1682 = pneg %p106
      $region42: #{san_forward.1} parent=39 // pred_check_branch
        %1684 = sbr.rel (%p1682) target = $region44
      $region43: #{san_forward.1} parent=39 // pred_region
        %p1685 = scmp.lt.s32.totalorder %s15, 1
        %s1686 = scalar_select %p1685, %s15, 1
        %s1687 = smul.addr %s1686, 26
        %s1688 = smul.addr %s1687, 8
        %s1689 = scalar_lea.vmem %s3, %s1688
      $region44: #{san_forward.1} parent=39 // pred_fallthru
        _
    $region40: #{san_forward.1} parent=5 // pred_fallthru
      _
  $region6: #{san_forward.1} parent=0 // loop_footer
    %s13 = sadd.s32 1, %s9
  $region7: #{san_forward.1} parent=0 // loop_footer_branch
    %8 = sbr.rel target = $region3
  $region8: #{san_forward.1} parent=0 // loop_exit
    _

</llo_original>
